<compile_context>
chip_gen: v6e
topology: v6e:2x2x1
jax: 0.10.0
libtpu: 0.0.40
codegen_flags: <defaults>
</compile_context>

<pallas_src>
import functools

import jax
import jax.numpy as jnp
from jax.experimental import pallas as pl
from jax.experimental.pallas import tpu as pltpu

EPS = 1e-8                 # torch.nn.CosineSimilarity eps
LAMBDA_WITHIN = 0.5
LAMBDA_ACROSS = 1.0
FEAT_DIM = 512             # CLIP ViT-B/32 embedding dim (also the hard-coded /512)

CLIP_MEAN = (0.48145466, 0.4578275, 0.40821073)
CLIP_STD = (0.26862954, 0.26130258, 0.27577711)


# -----------------------------------------------------------------------------
# Per-generation tuning: (# parallel grid cores, scoped-VMEM budget in bytes)
# -----------------------------------------------------------------------------
def _tpu_config():
    kind = ""
    try:
        kind = jax.devices()[0].device_kind.lower()
    except Exception:
        pass
    if "v7" in kind or "7x" in kind:
        # v7x: 2 TensorCores/chip, only 64 MiB physical VMEM -> keep headroom.
        return 2, 40 * 1024 * 1024
    if "v5" in kind or "v6" in kind:
        # v5e / v6e: 1 TensorCore, 128 MiB physical VMEM.
        return 1, 64 * 1024 * 1024
    # Unknown chip: single-core grid, conservative VMEM budget.
    return 1, 40 * 1024 * 1024


def _pick_tk(f_per_core, d, batch, w_itemsize, budget_bytes):
    """Largest tk (multiple of 128 dividing f_per_core) whose working set
    (double-buffered W + pixel tiles, dequant temporaries, resident partial)
    fits the scoped-VMEM budget."""
    assert f_per_core % 128 == 0
    n128 = f_per_core // 128
    fixed = 2 * 2 * batch * d * 4                    # resident f32 partial (x2 margin)
    cap = int(budget_bytes * 0.75)
    for m in range(n128, 0, -1):
        if n128 % m:
            continue
        tk = 128 * m
        need = (2 * tk * d * w_itemsize              # double-buffered int8 W tile
                + tk * d * 2                         # in-kernel bf16 dequant temp
                + 2 * 2 * batch * tk * 4             # double-buffered src+tgt f32 tiles
                + 2 * batch * tk * 2 * 2             # in-kernel bf16 pixel temps
                + fixed)
        if need <= cap:
            return tk
    return 128


# -----------------------------------------------------------------------------
# One-time parameter fold: preprocess affine -> encoder weights, int8 quantize
# -----------------------------------------------------------------------------
def fold_encoder_params(w, b, C, H, W):
    """x in [-1,1] -> (x+1)/2 -> (y-clip_mean)/clip_std folded into (w, b), then
    W quantized to int8 with per-output-column scales.

    Returns (w_q int8 [F, D], col_scale f32 [1, D], b_folded f32 [1, D]).
    One-time cost outside the hot path (touches W in full).
    """
    mean = jnp.asarray(CLIP_MEAN, jnp.float32)
    std = jnp.asarray(CLIP_STD, jnp.float32)
    scale_c = 0.5 / std                               # per-channel scale
    shift_c = (0.5 - mean) / std                      # per-channel shift
    F = C * H * W
    scale = jnp.repeat(scale_c, H * W).reshape(F, 1)  # per-feature (NCHW flatten)
    shift = jnp.repeat(shift_c, H * W).reshape(1, F)
    w_f = (w * scale).astype(jnp.float32)
    b_folded = (b + shift @ w).astype(jnp.float32)
    col_scale = jnp.maximum(jnp.max(jnp.abs(w_f), axis=0, keepdims=True),
                            1e-12) / 127.0
    w_q = jnp.clip(jnp.round(w_f / col_scale), -127, 127).astype(jnp.int8)
    return w_q, col_scale.astype(jnp.float32), b_folded


# -----------------------------------------------------------------------------
# Kernel 1: K-tiled streaming matmul into a resident per-core partial block
# -----------------------------------------------------------------------------
def matmul_partial_kernel(src_ref, tgt_ref, w_ref, part_ref):
    @pl.when(pl.program_id(1) == 0)
    def _init():
        part_ref[...] = jnp.zeros_like(part_ref)

    # int8 -> bf16 dequant (int8 values are exact in bf16); the per-column scale
    # factors out of the K-sum and is applied once in the epilogue kernel.
    w = w_ref[...].astype(jnp.bfloat16)
    part_ref[0] += jnp.dot(src_ref[...].astype(jnp.bfloat16), w,
                           preferred_element_type=jnp.float32)
    part_ref[1] += jnp.dot(tgt_ref[...].astype(jnp.bfloat16), w,
                           preferred_element_type=jnp.float32)


# -----------------------------------------------------------------------------
# Kernel 2: tiny epilogue — combine partials, scale+bias, norm, cosine losses
# -----------------------------------------------------------------------------
def _unit(v):
    # matches torch  v /= v.norm(dim=-1, keepdim=True)   (no eps, same as torch)
    return v * jax.lax.rsqrt(jnp.sum(v * v, axis=-1, keepdims=True))


def _cos_sim(x, y):
    # torch.nn.CosineSimilarity(dim=1, eps=1e-8), keepdims -> [N, 1]
    nx = jnp.sqrt(jnp.sum(x * x, axis=-1, keepdims=True))
    ny = jnp.sqrt(jnp.sum(y * y, axis=-1, keepdims=True))
    dot = jnp.sum(x * y, axis=-1, keepdims=True)
    return dot / (jnp.maximum(nx, EPS) * jnp.maximum(ny, EPS))


def epilogue_kernel(part_ref, scale_ref, b_ref, cond_ref, loss_ref, *enc_refs):
    feat = jnp.sum(part_ref[...], axis=0) * scale_ref[...] + b_ref[...]  # [2,B,D]
    # image_features /= image_features.norm(dim=-1, keepdim=True)
    enc = feat * jax.lax.rsqrt(jnp.sum(feat * feat, axis=-1, keepdims=True))
    if enc_refs:                                     # optional encodings writeback
        enc_refs[0][...] = enc

    src, tgt = enc[0], enc[1]                        # [B, D] each
    src_a, src_b = src[0:1], src[1:]
    tgt_a, tgt_b = tgt[0:1], tgt[1:]
    cond = cond_ref[...]                             # [1, D]

    # across_loss
    v_ref = _unit(tgt_a - src_a)                     # [1, D]
    v_samp = _unit(tgt_b - src_b)                    # [B-1, D]
    across = jnp.mean(1.0 - _cos_sim(v_ref, v_samp), axis=0, keepdims=True)

    # within_loss
    v_a = _unit(src_b - src_a) * (1.0 - cond)
    v_b = _unit(tgt_b - tgt_a) * (1.0 - cond)
    cond_sum = jnp.sum(cond, axis=-1, keepdims=True)
    within = jnp.mean(1.0 - _cos_sim(v_a, v_b), axis=0, keepdims=True) \
        * (1.0 - cond_sum / float(FEAT_DIM))         # hard-coded /512 as in torch

    loss_ref[...] = LAMBDA_ACROSS * across + LAMBDA_WITHIN * within


# -----------------------------------------------------------------------------
# Wrapper
# -----------------------------------------------------------------------------
def encode_and_loss(src_imgs, tgt_imgs, condition, w_q, col_scale, b_folded,
                    return_encodings=False):
    B, C, H, W = src_imgs.shape
    assert B >= 2, "RegularizeLoss needs batch >= 2 (anchor + samples)"
    F = C * H * W
    D = w_q.shape[1]

    nc, vmem_budget = _tpu_config()
    if F % (nc * 128) != 0:
        nc = 1
    if F % 128 == 0:
        tk = _pick_tk(F // nc, D, B, w_q.dtype.itemsize, vmem_budget)
    else:
        # TODO(synk): pad F to a multiple of 128 for large, non-aligned feature dims.
        nc, tk = 1, F
    n_k = (F // nc) // tk

    src_x = src_imgs.reshape(B, F)                   # stay f32; cast in-kernel
    tgt_x = tgt_imgs.reshape(B, F)

    partials = pl.pallas_call(
        matmul_partial_kernel,
        out_shape=jax.ShapeDtypeStruct((nc, 2, B, D), jnp.float32),
        grid_spec=pltpu.PrefetchScalarGridSpec(
            num_scalar_prefetch=0,
            grid=(nc, n_k),                          # (parallel cores, K reduction)
            in_specs=[
                pl.BlockSpec((B, tk), lambda c, k: (0, c * n_k + k)),   # src pixels
                pl.BlockSpec((B, tk), lambda c, k: (0, c * n_k + k)),   # tgt pixels
                pl.BlockSpec((tk, D), lambda c, k: (c * n_k + k, 0)),   # int8 W
            ],
            out_specs=pl.BlockSpec((None, 2, B, D), lambda c, k: (c, 0, 0, 0)),
        ),
        compiler_params=pltpu.CompilerParams(
            dimension_semantics=("parallel", "arbitrary"),
            vmem_limit_bytes=vmem_budget,
        ),
    )(src_x, tgt_x, w_q)

    loss_sds = jax.ShapeDtypeStruct((1, 1), jnp.float32)
    if return_encodings:
        loss, enc = pl.pallas_call(
            epilogue_kernel,
            out_shape=(loss_sds, jax.ShapeDtypeStruct((2, B, D), jnp.float32)),
        )(partials, col_scale, b_folded, condition)
        return loss[0, 0], enc
    loss = pl.pallas_call(epilogue_kernel, out_shape=loss_sds)(
        partials, col_scale, b_folded, condition)
    return loss[0, 0], None


def forward(src_imgs, tgt_imgs, condition, w_q, col_scale, b_folded):
    loss, _ = encode_and_loss(src_imgs, tgt_imgs, condition, w_q, col_scale,
                              b_folded, return_encodings=False)
    return loss


# -----------------------------------------------------------------------------
# Pure-JAX references for sanity checks
# -----------------------------------------------------------------------------
def _losses_from_encodings(src_enc, tgt_enc, condition):
    def cos(x, y):
        nx = jnp.linalg.norm(x, axis=-1)
        ny = jnp.linalg.norm(y, axis=-1)
        return jnp.sum(x * y, -1) / (jnp.maximum(nx, EPS) * jnp.maximum(ny, EPS))

    sa, sb = src_enc[0:1], src_enc[1:]
    ta, tb = tgt_enc[0:1], tgt_enc[1:]
    v_ref = ta - sa
    v_ref = v_ref / jnp.linalg.norm(v_ref, axis=-1, keepdims=True)
    v_smp = tb - sb
    v_smp = v_smp / jnp.linalg.norm(v_smp, axis=-1, keepdims=True)
    across = jnp.mean(1.0 - cos(v_ref, v_smp))
    va = sb - sa
    va = va / jnp.linalg.norm(va, axis=-1, keepdims=True)
    vb = tb - ta
    vb = vb / jnp.linalg.norm(vb, axis=-1, keepdims=True)
    va = va * (1.0 - condition)
    vb = vb * (1.0 - condition)
    within = jnp.mean(1.0 - cos(va, vb)) * (1.0 - jnp.sum(condition) / FEAT_DIM)
    return LAMBDA_ACROSS * across + LAMBDA_WITHIN * within


def reference_quantized(src_imgs, tgt_imgs, condition, w_q, col_scale, b_folded):
    """Mirrors kernel numerics: int8 dequant -> bf16 matmul -> f32 scale+bias."""
    B = src_imgs.shape[0]
    x = jnp.concatenate([src_imgs.reshape(B, -1), tgt_imgs.reshape(B, -1)],
                        axis=0).astype(jnp.bfloat16)
    w = w_q.astype(jnp.bfloat16)                     # int8 values exact in bf16
    f = jnp.dot(x, w, preferred_element_type=jnp.float32) * col_scale + b_folded
    enc = f / jnp.linalg.norm(f, axis=-1, keepdims=True)
    return _losses_from_encodings(enc[:B], enc[B:], condition), enc


def reference_f32(src_imgs, tgt_imgs, condition, w, b):
    """Torch-faithful math in f32 (explicit preprocess, unfolded, unquantized)."""
    B, C, H, W = src_imgs.shape
    mean = jnp.asarray(CLIP_MEAN, jnp.float32).reshape(1, C, 1, 1)
    std = jnp.asarray(CLIP_STD, jnp.float32).reshape(1, C, 1, 1)

    def enc(x):
        xp = ((x + 1.0) * 0.5 - mean) / std
        f = xp.reshape(B, -1) @ w + b
        return f / jnp.linalg.norm(f, axis=-1, keepdims=True)

    return _losses_from_encodings(enc(src_imgs), enc(tgt_imgs), condition)


# -----------------------------------------------------------------------------
if __name__ == "__main__":
    key = jax.random.PRNGKey(0)
    k1, k2, k3, k4, k5 = jax.random.split(key, 5)

    B, C, H, W = 4, 3, 16, 16        # small synthetic shapes (B >= 2 required)
    F = C * H * W                    # 768
    D = FEAT_DIM                     # 512

    src_imgs = jax.random.uniform(k1, (B, C, H, W), jnp.float32, -1.0, 1.0)
    tgt_imgs = jax.random.uniform(k2, (B, C, H, W), jnp.float32, -1.0, 1.0)
    condition = jax.random.bernoulli(k3, 0.1, (1, D)).astype(jnp.float32)

    # deterministic synthetic "CLIP encoder" parameters
    w = 0.02 * jax.random.normal(k4, (F, D), jnp.float32)
    b = 0.01 * jax.random.normal(k5, (1, D), jnp.float32)

    # one-time fold of the preprocess affine + int8 weight quantization
    w_q, col_scale, b_folded = fold_encoder_params(w, b, C, H, W)

    # loss-only path (skips the encodings HBM writeback)
    loss = jax.jit(forward)(src_imgs, tgt_imgs, condition, w_q, col_scale, b_folded)
    loss = jax.block_until_ready(loss)

    # encodings-returning path (same heavy kernel; epilogue also writes enc)
    loss2, enc = jax.jit(
        functools.partial(encode_and_loss, return_encodings=True)
    )(src_imgs, tgt_imgs, condition, w_q, col_scale, b_folded)
    loss2, enc = jax.block_until_ready((loss2, enc))

    ref_tight, ref_enc = reference_quantized(src_imgs, tgt_imgs, condition,
                                             w_q, col_scale, b_folded)
    ref_f32 = reference_f32(src_imgs, tgt_imgs, condition, w, b)

    # Tight checks against a reference mirroring the kernel's int8/bf16 numerics.
    assert jnp.allclose(loss, ref_tight, rtol=2e-3, atol=2e-3), (loss, ref_tight)
    assert jnp.allclose(loss2, loss, rtol=1e-5, atol=1e-5), (loss2, loss)
    assert jnp.allclose(enc[0], ref_enc[:B], rtol=1e-2, atol=1e-3)
    assert jnp.allclose(enc[1], ref_enc[B:], rtol=1e-2, atol=1e-3)
    # Loose check vs pure-f32 torch-faithful math (int8 + bf16 quantization gap).
    assert jnp.allclose(loss, ref_f32, rtol=1.5e-1, atol=1.5e-1), (loss, ref_f32)

    print("KERNEL_OK")
</pallas_src>

<mosaic_0001>
module attributes {stable_mosaic.version = 11 : i64} {
  func.func @matmul_partial_kernel(%arg0: i32, %arg1: i32, %arg2: memref<4x768xf32, #tpu.memory_space<vmem>>, %arg3: memref<4x768xf32, #tpu.memory_space<vmem>>, %arg4: memref<768x512xi8, #tpu.memory_space<vmem>>, %arg5: memref<1x2x4x512xf32, #tpu.memory_space<vmem>>) attributes {dimension_semantics = [#tpu.dimension_semantics<parallel>, #tpu.dimension_semantics<arbitrary>], iteration_bounds = array<i64: 1, 1>, scalar_prefetch = 0 : i64, scratch_operands = 0 : i64, tpu.core_type = #tpu.core_type<tc>, window_params = [{transform_indices = @transform_0, window_bounds = array<i64: 4, 768>}, {transform_indices = @transform_1, window_bounds = array<i64: 4, 768>}, {transform_indices = @transform_2, window_bounds = array<i64: 768, 512>}, {transform_indices = @transform_3, window_bounds = array<i64: 1, 2, 4, 512>}]} {
    %c0_i32 = arith.constant 0 : i32
    %0 = arith.cmpi eq, %arg1, %c0_i32 : i32
    %1 = arith.extui %0 : i1 to i32
    %c0_i32_0 = arith.constant 0 : i32
    %2 = arith.cmpi ne, %1, %c0_i32_0 : i32
    scf.if %2 {
      %cst_22 = arith.constant 0.000000e+00 : f32
      %23 = vector.broadcast %cst_22 : f32 to vector<2x4x512xf32>
      %c0_23 = arith.constant 0 : index
      %c0_24 = arith.constant 0 : index
      %c0_25 = arith.constant 0 : index
      %c0_26 = arith.constant 0 : index
      %24 = vector.load %arg5[%c0_23, %c0_24, %c0_25, %c0_26] : memref<1x2x4x512xf32, #tpu.memory_space<vmem>>, vector<1x2x4x512xf32>
      %25 = vector.shape_cast %24 : vector<1x2x4x512xf32> to vector<2x4x512xf32>
      %26 = vector.shape_cast %23 : vector<2x4x512xf32> to vector<1x2x4x512xf32>
      tpu.vector_store %arg5[%c0_23, %c0_24, %c0_25, %c0_26], %26 {strides = array<i32>} : memref<1x2x4x512xf32, #tpu.memory_space<vmem>>, vector<1x2x4x512xf32>,
    } else {
    }
    %c0 = arith.constant 0 : index
    %c0_1 = arith.constant 0 : index
    %3 = vector.load %arg4[%c0, %c0_1] : memref<768x512xi8, #tpu.memory_space<vmem>>, vector<768x512xi8>
    %4 = arith.sitofp %3 : vector<768x512xi8> to vector<768x512xbf16>
    %c0_2 = arith.constant 0 : index
    %c0_3 = arith.constant 0 : index
    %c0_4 = arith.constant 0 : index
    %c0_5 = arith.constant 0 : index
    %5 = vector.load %arg5[%c0_2, %c0_3, %c0_4, %c0_5] : memref<1x2x4x512xf32, #tpu.memory_space<vmem>>, vector<1x1x4x512xf32>
    %6 = vector.shape_cast %5 : vector<1x1x4x512xf32> to vector<4x512xf32>
    %c0_6 = arith.constant 0 : index
    %c0_7 = arith.constant 0 : index
    %7 = vector.load %arg2[%c0_6, %c0_7] : memref<4x768xf32, #tpu.memory_space<vmem>>, vector<4x768xf32>
    %8 = arith.truncf %7 : vector<4x768xf32> to vector<4x768xbf16>
    %cst = arith.constant dense<0.000000e+00> : vector<4x512xf32>
    %9 = tpu.matmul %8, %4, %cst {dimension_numbers = #tpu.dot_dimension_numbers<[1], [0], [0], [1], [0, 0, 1, 1], [], []>} : vector<4x768xbf16>, vector<768x512xbf16>, vector<4x512xf32> -> vector<4x512xf32>
    %10 = arith.addf %6, %9 : vector<4x512xf32>
    %c0_8 = arith.constant 0 : index
    %c0_9 = arith.constant 0 : index
    %c0_10 = arith.constant 0 : index
    %c0_11 = arith.constant 0 : index
    %11 = vector.load %arg5[%c0_8, %c0_9, %c0_10, %c0_11] : memref<1x2x4x512xf32, #tpu.memory_space<vmem>>, vector<1x1x4x512xf32>
    %12 = vector.shape_cast %11 : vector<1x1x4x512xf32> to vector<4x512xf32>
    %13 = vector.shape_cast %10 : vector<4x512xf32> to vector<1x1x4x512xf32>
    tpu.vector_store %arg5[%c0_8, %c0_9, %c0_10, %c0_11], %13 {strides = array<i32>} : memref<1x2x4x512xf32, #tpu.memory_space<vmem>>, vector<1x1x4x512xf32>,
    %c0_12 = arith.constant 0 : index
    %c1 = arith.constant 1 : index
    %c0_13 = arith.constant 0 : index
    %c0_14 = arith.constant 0 : index
    %14 = vector.load %arg5[%c0_12, %c1, %c0_13, %c0_14] : memref<1x2x4x512xf32, #tpu.memory_space<vmem>>, vector<1x1x4x512xf32>
    %15 = vector.shape_cast %14 : vector<1x1x4x512xf32> to vector<4x512xf32>
    %c0_15 = arith.constant 0 : index
    %c0_16 = arith.constant 0 : index
    %16 = vector.load %arg3[%c0_15, %c0_16] : memref<4x768xf32, #tpu.memory_space<vmem>>, vector<4x768xf32>
    %17 = arith.truncf %16 : vector<4x768xf32> to vector<4x768xbf16>
    %cst_17 = arith.constant dense<0.000000e+00> : vector<4x512xf32>
    %18 = tpu.matmul %17, %4, %cst_17 {dimension_numbers = #tpu.dot_dimension_numbers<[1], [0], [0], [1], [0, 0, 1, 1], [], []>} : vector<4x768xbf16>, vector<768x512xbf16>, vector<4x512xf32> -> vector<4x512xf32>
    %19 = arith.addf %15, %18 : vector<4x512xf32>
    %c0_18 = arith.constant 0 : index
    %c1_19 = arith.constant 1 : index
    %c0_20 = arith.constant 0 : index
    %c0_21 = arith.constant 0 : index
    %20 = vector.load %arg5[%c0_18, %c1_19, %c0_20, %c0_21] : memref<1x2x4x512xf32, #tpu.memory_space<vmem>>, vector<1x1x4x512xf32>
    %21 = vector.shape_cast %20 : vector<1x1x4x512xf32> to vector<4x512xf32>
    %22 = vector.shape_cast %19 : vector<4x512xf32> to vector<1x1x4x512xf32>
    tpu.vector_store %arg5[%c0_18, %c1_19, %c0_20, %c0_21], %22 {strides = array<i32>} : memref<1x2x4x512xf32, #tpu.memory_space<vmem>>, vector<1x1x4x512xf32>,
    return
  }
  func.func @transform_0(%arg0: i32, %arg1: i32) -> (i32, i32) {
    %c1_i32 = arith.constant 1 : i32
    %0 = arith.muli %arg0, %c1_i32 : i32
    %1 = arith.addi %0, %arg1 : i32
    %c0_i32 = arith.constant 0 : i32
    %c0_i32_0 = arith.constant 0 : i32
    return %c0_i32, %1 : i32, i32
  }
  func.func @transform_1(%arg0: i32, %arg1: i32) -> (i32, i32) {
    %c1_i32 = arith.constant 1 : i32
    %0 = arith.muli %arg0, %c1_i32 : i32
    %1 = arith.addi %0, %arg1 : i32
    %c0_i32 = arith.constant 0 : i32
    %c0_i32_0 = arith.constant 0 : i32
    return %c0_i32, %1 : i32, i32
  }
  func.func @transform_2(%arg0: i32, %arg1: i32) -> (i32, i32) {
    %c1_i32 = arith.constant 1 : i32
    %0 = arith.muli %arg0, %c1_i32 : i32
    %1 = arith.addi %0, %arg1 : i32
    %c0_i32 = arith.constant 0 : i32
    %c0_i32_0 = arith.constant 0 : i32
    return %1, %c0_i32 : i32, i32
  }
  func.func @transform_3(%arg0: i32, %arg1: i32) -> (i32, i32, i32, i32) {
    %c0_i32 = arith.constant 0 : i32
    %c0_i32_0 = arith.constant 0 : i32
    %c0_i32_1 = arith.constant 0 : i32
    %c0_i32_2 = arith.constant 0 : i32
    return %arg0, %c0_i32, %c0_i32_0, %c0_i32_1 : i32, i32, i32, i32
  }
}

module attributes {stable_mosaic.version = 11 : i64} {
  func.func @epilogue_kernel(%arg0: memref<1x2x4x512xf32, #tpu.memory_space<vmem>>, %arg1: memref<1x512xf32, #tpu.memory_space<vmem>>, %arg2: memref<1x512xf32, #tpu.memory_space<vmem>>, %arg3: memref<1x512xf32, #tpu.memory_space<vmem>>, %arg4: memref<1x1xf32, #tpu.memory_space<vmem>>) attributes {dimension_semantics = [], scalar_prefetch = 0 : i64, scratch_operands = 0 : i64, tpu.core_type = #tpu.core_type<tc>} {
    %c0 = arith.constant 0 : index
    %c0_0 = arith.constant 0 : index
    %c0_1 = arith.constant 0 : index
    %c0_2 = arith.constant 0 : index
    %0 = vector.load %arg0[%c0, %c0_0, %c0_1, %c0_2] : memref<1x2x4x512xf32, #tpu.memory_space<vmem>>, vector<1x2x4x512xf32>
    %cst = arith.constant dense<0.000000e+00> : vector<2x4x512xf32>
    %1 = vector.multi_reduction <add>, %0, %cst [0] : vector<1x2x4x512xf32> to vector<2x4x512xf32>
    %c0_3 = arith.constant 0 : index
    %c0_4 = arith.constant 0 : index
    %2 = vector.load %arg1[%c0_3, %c0_4] : memref<1x512xf32, #tpu.memory_space<vmem>>, vector<1x512xf32>
    %3 = vector.shape_cast %2 : vector<1x512xf32> to vector<1x1x512xf32>
    %4 = vector.broadcast %3 : vector<1x1x512xf32> to vector<2x4x512xf32>
    %5 = arith.mulf %1, %4 : vector<2x4x512xf32>
    %c0_5 = arith.constant 0 : index
    %c0_6 = arith.constant 0 : index
    %6 = vector.load %arg2[%c0_5, %c0_6] : memref<1x512xf32, #tpu.memory_space<vmem>>, vector<1x512xf32>
    %7 = vector.shape_cast %6 : vector<1x512xf32> to vector<1x1x512xf32>
    %8 = vector.broadcast %7 : vector<1x1x512xf32> to vector<2x4x512xf32>
    %9 = arith.addf %5, %8 : vector<2x4x512xf32>
    %10 = arith.mulf %9, %9 : vector<2x4x512xf32>
    %cst_7 = arith.constant dense<0.000000e+00> : vector<2x4xf32>
    %11 = vector.multi_reduction <add>, %10, %cst_7 [2] : vector<2x4x512xf32> to vector<2x4xf32>
    %12 = vector.shape_cast %11 : vector<2x4xf32> to vector<2x4x1xf32>
    %13 = math.rsqrt %12 : vector<2x4x1xf32>
    %14 = vector.broadcast %13 : vector<2x4x1xf32> to vector<2x4x512xf32>
    %15 = arith.mulf %9, %14 : vector<2x4x512xf32>
    %16 = vector.extract_strided_slice %15 {offsets = [0, 0, 0], sizes = [1, 4, 512], strides = [1, 1, 1]} : vector<2x4x512xf32> to vector<1x4x512xf32>
    %17 = vector.shape_cast %16 : vector<1x4x512xf32> to vector<4x512xf32>
    %18 = vector.extract_strided_slice %15 {offsets = [1, 0, 0], sizes = [1, 4, 512], strides = [1, 1, 1]} : vector<2x4x512xf32> to vector<1x4x512xf32>
    %19 = vector.shape_cast %18 : vector<1x4x512xf32> to vector<4x512xf32>
    %20 = vector.extract_strided_slice %17 {offsets = [0, 0], sizes = [1, 512], strides = [1, 1]} : vector<4x512xf32> to vector<1x512xf32>
    %21 = vector.extract_strided_slice %17 {offsets = [1, 0], sizes = [3, 512], strides = [1, 1]} : vector<4x512xf32> to vector<3x512xf32>
    %22 = vector.extract_strided_slice %19 {offsets = [0, 0], sizes = [1, 512], strides = [1, 1]} : vector<4x512xf32> to vector<1x512xf32>
    %23 = vector.extract_strided_slice %19 {offsets = [1, 0], sizes = [3, 512], strides = [1, 1]} : vector<4x512xf32> to vector<3x512xf32>
    %c0_8 = arith.constant 0 : index
    %c0_9 = arith.constant 0 : index
    %24 = vector.load %arg3[%c0_8, %c0_9] : memref<1x512xf32, #tpu.memory_space<vmem>>, vector<1x512xf32>
    %25 = arith.subf %22, %20 : vector<1x512xf32>
    %26 = arith.mulf %25, %25 : vector<1x512xf32>
    %cst_10 = arith.constant dense<0.000000e+00> : vector<1xf32>
    %27 = vector.multi_reduction <add>, %26, %cst_10 [1] : vector<1x512xf32> to vector<1xf32>
    %28 = vector.shape_cast %27 : vector<1xf32> to vector<1x1xf32>
    %29 = math.rsqrt %28 : vector<1x1xf32>
    %30 = vector.broadcast %29 : vector<1x1xf32> to vector<1x512xf32>
    %31 = arith.mulf %25, %30 : vector<1x512xf32>
    %32 = arith.subf %23, %21 : vector<3x512xf32>
    %33 = arith.mulf %32, %32 : vector<3x512xf32>
    %cst_11 = arith.constant dense<0.000000e+00> : vector<3xf32>
    %34 = vector.multi_reduction <add>, %33, %cst_11 [1] : vector<3x512xf32> to vector<3xf32>
    %35 = vector.shape_cast %34 : vector<3xf32> to vector<3x1xf32>
    %36 = math.rsqrt %35 : vector<3x1xf32>
    %37 = vector.broadcast %36 : vector<3x1xf32> to vector<3x512xf32>
    %38 = arith.mulf %32, %37 : vector<3x512xf32>
    %39 = arith.mulf %31, %31 : vector<1x512xf32>
    %cst_12 = arith.constant dense<0.000000e+00> : vector<1xf32>
    %40 = vector.multi_reduction <add>, %39, %cst_12 [1] : vector<1x512xf32> to vector<1xf32>
    %41 = vector.shape_cast %40 : vector<1xf32> to vector<1x1xf32>
    %42 = math.sqrt %41 : vector<1x1xf32>
    %43 = arith.mulf %38, %38 : vector<3x512xf32>
    %cst_13 = arith.constant dense<0.000000e+00> : vector<3xf32>
    %44 = vector.multi_reduction <add>, %43, %cst_13 [1] : vector<3x512xf32> to vector<3xf32>
    %45 = vector.shape_cast %44 : vector<3xf32> to vector<3x1xf32>
    %46 = math.sqrt %45 : vector<3x1xf32>
    %47 = vector.broadcast %31 : vector<1x512xf32> to vector<3x512xf32>
    %48 = arith.mulf %47, %38 : vector<3x512xf32>
    %cst_14 = arith.constant dense<0.000000e+00> : vector<3xf32>
    %49 = vector.multi_reduction <add>, %48, %cst_14 [1] : vector<3x512xf32> to vector<3xf32>
    %50 = vector.shape_cast %49 : vector<3xf32> to vector<3x1xf32>
    %cst_15 = arith.constant 9.99999993E-9 : f32
    %51 = vector.broadcast %cst_15 : f32 to vector<1x1xf32>
    %52 = arith.maximumf %42, %51 : vector<1x1xf32>
    %cst_16 = arith.constant 9.99999993E-9 : f32
    %53 = vector.broadcast %cst_16 : f32 to vector<3x1xf32>
    %54 = arith.maximumf %46, %53 : vector<3x1xf32>
    %55 = vector.broadcast %52 : vector<1x1xf32> to vector<3x1xf32>
    %56 = arith.mulf %55, %54 : vector<3x1xf32>
    %57 = arith.divf %50, %56 : vector<3x1xf32>
    %cst_17 = arith.constant 1.000000e+00 : f32
    %58 = vector.broadcast %cst_17 : f32 to vector<3x1xf32>
    %59 = arith.subf %58, %57 : vector<3x1xf32>
    %cst_18 = arith.constant dense<0.000000e+00> : vector<1xf32>
    %60 = vector.multi_reduction <add>, %59, %cst_18 [0] : vector<3x1xf32> to vector<1xf32>
    %61 = vector.shape_cast %60 : vector<1xf32> to vector<1x1xf32>
    %cst_19 = arith.constant 3.000000e+00 : f32
    %62 = vector.broadcast %cst_19 : f32 to vector<1x1xf32>
    %63 = arith.divf %61, %62 : vector<1x1xf32>
    %64 = vector.broadcast %20 : vector<1x512xf32> to vector<3x512xf32>
    %65 = arith.subf %21, %64 : vector<3x512xf32>
    %66 = arith.mulf %65, %65 : vector<3x512xf32>
    %cst_20 = arith.constant dense<0.000000e+00> : vector<3xf32>
    %67 = vector.multi_reduction <add>, %66, %cst_20 [1] : vector<3x512xf32> to vector<3xf32>
    %68 = vector.shape_cast %67 : vector<3xf32> to vector<3x1xf32>
    %69 = math.rsqrt %68 : vector<3x1xf32>
    %70 = vector.broadcast %69 : vector<3x1xf32> to vector<3x512xf32>
    %71 = arith.mulf %65, %70 : vector<3x512xf32>
    %cst_21 = arith.constant 1.000000e+00 : f32
    %72 = vector.broadcast %cst_21 : f32 to vector<1x512xf32>
    %73 = arith.subf %72, %24 : vector<1x512xf32>
    %74 = vector.broadcast %73 : vector<1x512xf32> to vector<3x512xf32>
    %75 = arith.mulf %71, %74 : vector<3x512xf32>
    %76 = vector.broadcast %22 : vector<1x512xf32> to vector<3x512xf32>
    %77 = arith.subf %23, %76 : vector<3x512xf32>
    %78 = arith.mulf %77, %77 : vector<3x512xf32>
    %cst_22 = arith.constant dense<0.000000e+00> : vector<3xf32>
    %79 = vector.multi_reduction <add>, %78, %cst_22 [1] : vector<3x512xf32> to vector<3xf32>
    %80 = vector.shape_cast %79 : vector<3xf32> to vector<3x1xf32>
    %81 = math.rsqrt %80 : vector<3x1xf32>
    %82 = vector.broadcast %81 : vector<3x1xf32> to vector<3x512xf32>
    %83 = arith.mulf %77, %82 : vector<3x512xf32>
    %cst_23 = arith.constant 1.000000e+00 : f32
    %84 = vector.broadcast %cst_23 : f32 to vector<1x512xf32>
    %85 = arith.subf %84, %24 : vector<1x512xf32>
    %86 = vector.broadcast %85 : vector<1x512xf32> to vector<3x512xf32>
    %87 = arith.mulf %83, %86 : vector<3x512xf32>
    %cst_24 = arith.constant dense<0.000000e+00> : vector<1xf32>
    %88 = vector.multi_reduction <add>, %24, %cst_24 [1] : vector<1x512xf32> to vector<1xf32>
    %89 = vector.shape_cast %88 : vector<1xf32> to vector<1x1xf32>
    %90 = arith.mulf %75, %75 : vector<3x512xf32>
    %cst_25 = arith.constant dense<0.000000e+00> : vector<3xf32>
    %91 = vector.multi_reduction <add>, %90, %cst_25 [1] : vector<3x512xf32> to vector<3xf32>
    %92 = vector.shape_cast %91 : vector<3xf32> to vector<3x1xf32>
    %93 = math.sqrt %92 : vector<3x1xf32>
    %94 = arith.mulf %87, %87 : vector<3x512xf32>
    %cst_26 = arith.constant dense<0.000000e+00> : vector<3xf32>
    %95 = vector.multi_reduction <add>, %94, %cst_26 [1] : vector<3x512xf32> to vector<3xf32>
    %96 = vector.shape_cast %95 : vector<3xf32> to vector<3x1xf32>
    %97 = math.sqrt %96 : vector<3x1xf32>
    %98 = arith.mulf %75, %87 : vector<3x512xf32>
    %cst_27 = arith.constant dense<0.000000e+00> : vector<3xf32>
    %99 = vector.multi_reduction <add>, %98, %cst_27 [1] : vector<3x512xf32> to vector<3xf32>
    %100 = vector.shape_cast %99 : vector<3xf32> to vector<3x1xf32>
    %cst_28 = arith.constant 9.99999993E-9 : f32
    %101 = vector.broadcast %cst_28 : f32 to vector<3x1xf32>
    %102 = arith.maximumf %93, %101 : vector<3x1xf32>
    %cst_29 = arith.constant 9.99999993E-9 : f32
    %103 = vector.broadcast %cst_29 : f32 to vector<3x1xf32>
    %104 = arith.maximumf %97, %103 : vector<3x1xf32>
    %105 = arith.mulf %102, %104 : vector<3x1xf32>
    %106 = arith.divf %100, %105 : vector<3x1xf32>
    %cst_30 = arith.constant 1.000000e+00 : f32
    %107 = vector.broadcast %cst_30 : f32 to vector<3x1xf32>
    %108 = arith.subf %107, %106 : vector<3x1xf32>
    %cst_31 = arith.constant dense<0.000000e+00> : vector<1xf32>
    %109 = vector.multi_reduction <add>, %108, %cst_31 [0] : vector<3x1xf32> to vector<1xf32>
    %110 = vector.shape_cast %109 : vector<1xf32> to vector<1x1xf32>
    %cst_32 = arith.constant 3.000000e+00 : f32
    %111 = vector.broadcast %cst_32 : f32 to vector<1x1xf32>
    %112 = arith.divf %110, %111 : vector<1x1xf32>
    %cst_33 = arith.constant 5.120000e+02 : f32
    %113 = vector.broadcast %cst_33 : f32 to vector<1x1xf32>
    %114 = arith.divf %89, %113 : vector<1x1xf32>
    %cst_34 = arith.constant 1.000000e+00 : f32
    %115 = vector.broadcast %cst_34 : f32 to vector<1x1xf32>
    %116 = arith.subf %115, %114 : vector<1x1xf32>
    %117 = arith.mulf %112, %116 : vector<1x1xf32>
    %cst_35 = arith.constant 1.000000e+00 : f32
    %118 = vector.broadcast %cst_35 : f32 to vector<1x1xf32>
    %119 = arith.mulf %118, %63 : vector<1x1xf32>
    %cst_36 = arith.constant 5.000000e-01 : f32
    %120 = vector.broadcast %cst_36 : f32 to vector<1x1xf32>
    %121 = arith.mulf %120, %117 : vector<1x1xf32>
    %122 = arith.addf %119, %121 : vector<1x1xf32>
    %c0_37 = arith.constant 0 : index
    %c0_38 = arith.constant 0 : index
    %123 = vector.load %arg4[%c0_37, %c0_38] : memref<1x1xf32, #tpu.memory_space<vmem>>, vector<1x1xf32>
    tpu.vector_store %arg4[%c0_37, %c0_38], %122 {strides = array<i32>} : memref<1x1xf32, #tpu.memory_space<vmem>>, vector<1x1xf32>,
    return
  }
}

</mosaic_0001>

<llo_original>
// kernel: forward.3
$region0: #{forward.3}
  #allocation0 [shape = 'u32[]', space=smem, size = 0x4, offset = 0x4, fixed_abs, tag = 'smem constant byte address 0x4 - core index']
  #allocation1 [shape = 'u32[144,128]{1,0:T(1,128)}', space=vmem, size = 0x12000, scoped, tag = 'internal scratch']
  %s0 = inlined_call_operand.vmem [shape: f32[1,2,4,512], index: 0, kind: input, shape index: {}]
  %s1 = inlined_call_operand.vmem [shape: f32[1,512], index: 1, kind: input, shape index: {}]
  %s2 = inlined_call_operand.vmem [shape: f32[1,512], index: 2, kind: input, shape index: {}]
  %s3 = inlined_call_operand.vmem [shape: f32[1,512], index: 3, kind: input, shape index: {}]
  %s4 = inlined_call_operand.hbm [shape: f32[1,1], index: 4, kind: output, shape index: {}]
  %s5 = sld [smem:[#allocation0]]
  $region26: #{forward.3} parent=0
    _
  %s7 = ssub.s32 1, %s5
  %s8 = scalar_select 0, %s7, %s5
  $region1: #{forward.3} parent=0
    #allocation2 [shape = 'u8[512]{0}', space=vmem, size = 0x400, scoped, tag = 'output window, operand 0, single buffered']
    #allocation3 [shape = 's32[1]{0}', space=sflag, size = 0x4, scoped, tag = 'scoped memory for forward.3']
    %9 = vsyncpa [#allocation3], 0
    // Predicated region
    $region2: #{forward.3} parent=1 // pred_check
      _
    $region3: #{forward.3} parent=1 // pred_check_branch
      %11 = sbr.rel (0) target = $region5
    $region4: #{forward.3} parent=1 // pred_region
      _
    $region5: #{forward.3} parent=1 // pred_fallthru
      _
    // Predicated region
    $region6: #{forward.3} parent=1 // pred_check
      _
    $region7: #{forward.3} parent=1 // pred_check_branch
      %13 = sbr.rel (0) target = $region9
    $region8: #{forward.3} parent=1 // pred_region
      _
    $region9: #{forward.3} parent=1 // pred_fallthru
      _
    // Predicated region
    $region10: #{forward.3} parent=1 // pred_check
      _
    $region11: #{forward.3} parent=1 // pred_check_branch
      %15 = sbr.rel (0) target = $region13
    $region12: #{forward.3} parent=1 // pred_region
      _
    $region13: #{forward.3} parent=1 // pred_fallthru
      _
    // Predicated region
    $region14: #{forward.3} parent=1 // pred_check
      _
    $region15: #{forward.3} parent=1 // pred_check_branch
      %17 = sbr.rel (0) target = $region17
    $region16: #{forward.3} parent=1 // pred_region
      _
    $region17: #{forward.3} parent=1 // pred_fallthru
      _
    %v18 = vld [vmem:[%s0] sm:$0xff]
    %v19 = vld [vmem:[%s0 + $0x8] sm:$0xff]
    %v20 = vld [vmem:[%s0 + $0x10] sm:$0xff]
    %v21 = vld [vmem:[%s0 + $0x18] sm:$0xff]
    %v22 = vadd.f32 %v18, 0.0
    %v23 = vadd.f32 %v19, 0.0
    %v24 = vadd.f32 %v20, 0.0
    %v25 = vadd.f32 %v21, 0.0
    %v26 = vld [vmem:[%s1] sm:$0xf]
    %v28 = vlaneseq
    %v29 = vshrl.u32 %v28, 7
    %v30 = vsub.s32 0, %v29
    %v31 = vrot.slane %v26, %v30
    %v32 = vlaneseq
    %v33 = vshrl.u32 %v32, 7
    %v34 = vsub.s32 1, %v33
    %v35 = vrot.slane %v26, %v34
    %v36 = vlaneseq
    %v37 = vshrl.u32 %v36, 7
    %v38 = vsub.s32 2, %v37
    %v39 = vrot.slane %v26, %v38
    %v40 = vlaneseq
    %v41 = vshrl.u32 %v40, 7
    %v42 = vsub.s32 3, %v41
    %v43 = vrot.slane %v26, %v42
    %v44 = vcombine.low %v31, %v35
    %v45 = vcombine.low %v39, %v43
    %v48 = vmul.f32 %v22, %v44
    %v49 = vmul.f32 %v23, %v45
    %v50 = vmul.f32 %v24, %v44
    %v51 = vmul.f32 %v25, %v45
    %v52 = vld [vmem:[%s2] sm:$0xf]
    %v54 = vlaneseq
    %v55 = vshrl.u32 %v54, 7
    %v56 = vsub.s32 0, %v55
    %v57 = vrot.slane %v52, %v56
    %v58 = vlaneseq
    %v59 = vshrl.u32 %v58, 7
    %v60 = vsub.s32 1, %v59
    %v61 = vrot.slane %v52, %v60
    %v62 = vlaneseq
    %v63 = vshrl.u32 %v62, 7
    %v64 = vsub.s32 2, %v63
    %v65 = vrot.slane %v52, %v64
    %v66 = vlaneseq
    %v67 = vshrl.u32 %v66, 7
    %v68 = vsub.s32 3, %v67
    %v69 = vrot.slane %v52, %v68
    %v70 = vcombine.low %v57, %v61
    %v71 = vcombine.low %v65, %v69
    %v74 = vadd.f32 %v48, %v70
    %v75 = vadd.f32 %v49, %v71
    %v76 = vadd.f32 %v50, %v70
    %v77 = vadd.f32 %v51, %v71
    %v78 = vmul.f32 %v74, %v74
    %v79 = vmul.f32 %v75, %v75
    %v80 = vmul.f32 %v76, %v76
    %v81 = vmul.f32 %v77, %v77
    %v86 = vcombine.high %v78, %v78
    %v87 = vcombine.high %v79, %v79
    %v88 = vcombine.high %v80, %v80
    %v89 = vcombine.high %v81, %v81
    %vm94 = vcmask 1043456
    %v95 = vsel %vm94, %v78, 0.0
    %v96 = vsel %vm94, %v86, 0.0
    %v97 = vadd.f32 %v95, %v96
    %v98 = vsel %vm94, %v79, 0.0
    %v99 = vadd.f32 %v97, %v98
    %v100 = vsel %vm94, %v87, 0.0
    %v101 = vadd.f32 %v99, %v100
    %102 = vadd.xlane.f32.xlu0 %v101
    %v103 = vpop.xlane.xlu0 %102
    %v104 = vsel %vm94, %v80, 0.0
    %v105 = vsel %vm94, %v88, 0.0
    %v106 = vadd.f32 %v104, %v105
    %v107 = vsel %vm94, %v81, 0.0
    %v108 = vadd.f32 %v106, %v107
    %v109 = vsel %vm94, %v89, 0.0
    %v110 = vadd.f32 %v108, %v109
    %111 = vadd.xlane.f32.xlu0 %v110
    %v112 = vpop.xlane.xlu0 %111
    %v113 = vrsqrt.pop %v103
    %v114 = vrsqrt.pop %v112
    %v118 = vunpack.c.l.s4 839922192
    %v119 = vunpack.c.0.s8 %v118
    %v120 = vlaneseq
    %v121 = vshrl.u32 %v120, 7
    %v122 = vsub.s32 %v119, %v121
    %v123 = vrot.slane %v113, %v122
    %v125 = vunpack.c.l.s4 839922192
    %v126 = vunpack.c.0.s8 %v125
    %v127 = vlaneseq
    %v128 = vshrl.u32 %v127, 7
    %v129 = vsub.s32 %v126, %v128
    %v130 = vrot.slane %v114, %v129
    %v133 = vmul.f32 %v74, %v123
    %v134 = vmul.f32 %v75, %v123
    %v135 = vmul.f32 %v76, %v130
    %v136 = vmul.f32 %v77, %v130
    %v137 = vld [vmem:[%s3] sm:$0xf]
    %v138 = vsub.f32 %v135, %v133
    %v139 = vsub.f32 %v136, %v134
    %v140 = vmul.f32 %v138, %v138
    %v141 = vmul.f32 %v139, %v139
    %v144 = vlaneseq
    %v145 = vshrl.u32 %v144, 7
    %v146 = vsub.s32 0, %v145
    %v147 = vrot.slane %v140, %v146
    %v148 = vlaneseq
    %v149 = vshrl.u32 %v148, 7
    %v150 = vsub.s32 4, %v149
    %v151 = vrot.slane %v140, %v150
    %v152 = vlaneseq
    %v153 = vshrl.u32 %v152, 7
    %v154 = vsub.s32 0, %v153
    %v155 = vrot.slane %v141, %v154
    %v156 = vlaneseq
    %v157 = vshrl.u32 %v156, 7
    %v158 = vsub.s32 4, %v157
    %v159 = vrot.slane %v141, %v158
    %vm164 = vcmask 1040384
    %v165 = vsel %vm164, %v147, 0.0
    %v166 = vsel %vm164, %v151, 0.0
    %v167 = vadd.f32 %v165, %v166
    %v168 = vsel %vm164, %v155, 0.0
    %v169 = vadd.f32 %v167, %v168
    %v170 = vsel %vm164, %v159, 0.0
    %v171 = vadd.f32 %v169, %v170
    %172 = vadd.xlane.f32.xlu0 %v171
    %v173 = vpop.xlane.xlu0 %172
    %v174 = vrsqrt.pop %v173
    %v177 = vunpack.c.l.s4 839922192
    %v178 = vunpack.c.0.s8 %v177
    %v179 = vlaneseq
    %v180 = vshrl.u32 %v179, 7
    %v181 = vsub.s32 %v178, %v180
    %v182 = vrot.slane %v174, %v181
    %v184 = vmul.f32 %v138, %v182
    %v185 = vmul.f32 %v139, %v182
    %v186 = vcombine.high %v140, %v140
    %v187 = vcombine.high %v141, %v141
    %vm190 = vcmask 1043457
    %v191 = vsel %vm190, %v140, 0.0
    %v192 = vsel %vm190, %v186, 0.0
    %v193 = vadd.f32 %v191, %v192
    %v194 = vsel %vm190, %v141, 0.0
    %v195 = vadd.f32 %v193, %v194
    %v196 = vsel %vm190, %v187, 0.0
    %v197 = vadd.f32 %v195, %v196
    %198 = vadd.xlane.f32.xlu0 %v197
    %v199 = vpop.xlane.xlu0 %198
    %v200 = vrsqrt.pop %v199
    %v203 = vunpack.c.l.s4 839922192
    %v204 = vunpack.c.0.s8 %v203
    %v205 = vlaneseq
    %v206 = vshrl.u32 %v205, 7
    %v207 = vsub.s32 %v204, %v206
    %v208 = vrot.slane %v200, %v207
    %v210 = vmul.f32 %v138, %v208
    %v211 = vmul.f32 %v139, %v208
    %v212 = vmul.f32 %v184, %v184
    %v213 = vmul.f32 %v185, %v185
    %v216 = vlaneseq
    %v217 = vshrl.u32 %v216, 7
    %v218 = vsub.s32 0, %v217
    %v219 = vrot.slane %v212, %v218
    %v220 = vlaneseq
    %v221 = vshrl.u32 %v220, 7
    %v222 = vsub.s32 4, %v221
    %v223 = vrot.slane %v212, %v222
    %v224 = vlaneseq
    %v225 = vshrl.u32 %v224, 7
    %v226 = vsub.s32 0, %v225
    %v227 = vrot.slane %v213, %v226
    %v228 = vlaneseq
    %v229 = vshrl.u32 %v228, 7
    %v230 = vsub.s32 4, %v229
    %v231 = vrot.slane %v213, %v230
    %v236 = vsel %vm164, %v219, 0.0
    %v237 = vsel %vm164, %v223, 0.0
    %v238 = vadd.f32 %v236, %v237
    %v239 = vsel %vm164, %v227, 0.0
    %v240 = vadd.f32 %v238, %v239
    %v241 = vsel %vm164, %v231, 0.0
    %v242 = vadd.f32 %v240, %v241
    %243 = vadd.xlane.f32.xlu0 %v242
    %v244 = vpop.xlane.xlu0 %243
    %v245 = vrsqrt.pop %v244
    %v246 = vmul.f32 %v244, %v245
    %vm247 = vcmp.eq.f32.partialorder %v244, inf
    %v248 = vsel %vm247, %v244, %v246
    %vm249 = vcmp.eq.f32.partialorder %v244, 0.0
    %v250 = vand.u32 %v244, 2147483648
    %v251 = vsel %vm249, %v250, %v248
    %v252 = vmul.f32 %v210, %v210
    %v253 = vmul.f32 %v211, %v211
    %v256 = vcombine.high %v252, %v252
    %v257 = vcombine.high %v253, %v253
    %v260 = vsel %vm190, %v252, 0.0
    %v261 = vsel %vm190, %v256, 0.0
    %v262 = vadd.f32 %v260, %v261
    %v263 = vsel %vm190, %v253, 0.0
    %v264 = vadd.f32 %v262, %v263
    %v265 = vsel %vm190, %v257, 0.0
    %v266 = vadd.f32 %v264, %v265
    %267 = vadd.xlane.f32.xlu0 %v266
    %v268 = vpop.xlane.xlu0 %267
    %v269 = vrsqrt.pop %v268
    %v270 = vmul.f32 %v268, %v269
    %vm271 = vcmp.eq.f32.partialorder %v268, inf
    %v272 = vsel %vm271, %v268, %v270
    %vm273 = vcmp.eq.f32.partialorder %v268, 0.0
    %v274 = vand.u32 %v268, 2147483648
    %v275 = vsel %vm273, %v274, %v272
    %v278 = vlaneseq
    %v279 = vshrl.u32 %v278, 7
    %v280 = vsub.s32 0, %v279
    %v281 = vrot.slane %v184, %v280
    %v282 = vlaneseq
    %v283 = vshrl.u32 %v282, 7
    %v284 = vsub.s32 4, %v283
    %v285 = vrot.slane %v184, %v284
    %v286 = vlaneseq
    %v287 = vshrl.u32 %v286, 7
    %v288 = vsub.s32 0, %v287
    %v289 = vrot.slane %v185, %v288
    %v290 = vlaneseq
    %v291 = vshrl.u32 %v290, 7
    %v292 = vsub.s32 4, %v291
    %v293 = vrot.slane %v185, %v292
    %v298 = vlaneseq
    %v299 = vshrl.u32 %v298, 7
    %v300 = vsub.s32 0, %v299
    %v301 = vrot.slane %v281, %v300
    %v302 = vlaneseq
    %v303 = vshrl.u32 %v302, 7
    %v304 = vsub.s32 0, %v303
    %v305 = vrot.slane %v285, %v304
    %v306 = vlaneseq
    %v307 = vshrl.u32 %v306, 7
    %v308 = vsub.s32 0, %v307
    %v309 = vrot.slane %v289, %v308
    %v310 = vlaneseq
    %v311 = vshrl.u32 %v310, 7
    %v312 = vsub.s32 0, %v311
    %v313 = vrot.slane %v293, %v312
    %v316 = vcombine.high %v210, %v210
    %v317 = vcombine.high %v211, %v211
    %v318 = vrot.slane %v210, 1
    %v319 = vrot.slane %v316, 1
    %v320 = vrot.slane %v211, 1
    %v321 = vrot.slane %v317, 1
    %v326 = vmul.f32 %v301, %v318
    %v327 = vmul.f32 %v305, %v319
    %v328 = vmul.f32 %v309, %v320
    %v329 = vmul.f32 %v313, %v321
    %vm330 = vcmask 1042432
    %v331 = vsel %vm330, %v326, 0.0
    %v332 = vsel %vm330, %v327, 0.0
    %v333 = vadd.f32 %v331, %v332
    %v334 = vsel %vm330, %v328, 0.0
    %v335 = vadd.f32 %v333, %v334
    %v336 = vsel %vm330, %v329, 0.0
    %v337 = vadd.f32 %v335, %v336
    %338 = vadd.xlane.f32.xlu0 %v337
    %v339 = vpop.xlane.xlu0 %338
    %v340 = vmax.f32 %v251, 1e-08
    %v341 = vmax.f32 %v275, 1e-08
    %v342 = vlaneseq
    %v343 = vshrl.u32 %v342, 7
    %v344 = vsub.s32 0, %v343
    %v345 = vrot.slane %v340, %v344
    %v346 = vmul.f32 %v345, %v341
    %v348 = vrot.slane %v346, 1
    %v350 = vrcp.pop %v348
    %v351 = vmul.f32 %v339, %v350
    %v352 = vsub.f32 1.0, %v351
    %vm353 = vcmask 2048
    %v354 = vsel %vm353, %v352, 0.0
    %v355 = vrot.slane %v354, 4
    %v356 = vadd.f32 %v354, %v355
    %v357 = vrot.slane %v356, 2
    %v358 = vadd.f32 %v356, %v357
    %v359 = vrot.slane %v358, 1
    %v360 = vadd.f32 %v358, %v359
    %v361 = vrcp.pop 3.0
    %v362 = vmul.f32 %v360, %v361
    %v365 = vlaneseq
    %v366 = vshrl.u32 %v365, 7
    %v367 = vsub.s32 0, %v366
    %v368 = vrot.slane %v133, %v367
    %v369 = vlaneseq
    %v370 = vshrl.u32 %v369, 7
    %v371 = vsub.s32 4, %v370
    %v372 = vrot.slane %v133, %v371
    %v373 = vlaneseq
    %v374 = vshrl.u32 %v373, 7
    %v375 = vsub.s32 0, %v374
    %v376 = vrot.slane %v134, %v375
    %v377 = vlaneseq
    %v378 = vshrl.u32 %v377, 7
    %v379 = vsub.s32 4, %v378
    %v380 = vrot.slane %v134, %v379
    %v385 = vlaneseq
    %v386 = vshrl.u32 %v385, 7
    %v387 = vsub.s32 0, %v386
    %v388 = vrot.slane %v368, %v387
    %v389 = vlaneseq
    %v390 = vshrl.u32 %v389, 7
    %v391 = vsub.s32 0, %v390
    %v392 = vrot.slane %v372, %v391
    %v393 = vlaneseq
    %v394 = vshrl.u32 %v393, 7
    %v395 = vsub.s32 0, %v394
    %v396 = vrot.slane %v376, %v395
    %v397 = vlaneseq
    %v398 = vshrl.u32 %v397, 7
    %v399 = vsub.s32 0, %v398
    %v400 = vrot.slane %v380, %v399
    %v405 = vcombine.low %v388, %v392
    %v406 = vcombine.low %v396, %v400
    %v407 = vrot.slane %v405, 7
    %v408 = vrot.slane %v406, 7
    %v411 = vsub.f32 %v133, %v407
    %v412 = vsub.f32 %v134, %v408
    %v413 = vmul.f32 %v411, %v411
    %v414 = vmul.f32 %v412, %v412
    %v417 = vcombine.high %v413, %v413
    %v418 = vcombine.high %v414, %v414
    %v421 = vsel %vm190, %v413, 0.0
    %v422 = vsel %vm190, %v417, 0.0
    %v423 = vadd.f32 %v421, %v422
    %v424 = vsel %vm190, %v414, 0.0
    %v425 = vadd.f32 %v423, %v424
    %v426 = vsel %vm190, %v418, 0.0
    %v427 = vadd.f32 %v425, %v426
    %428 = vadd.xlane.f32.xlu0 %v427
    %v429 = vpop.xlane.xlu0 %428
    %v430 = vrsqrt.pop %v429
    %v433 = vunpack.c.l.s4 839922192
    %v434 = vunpack.c.0.s8 %v433
    %v435 = vlaneseq
    %v436 = vshrl.u32 %v435, 7
    %v437 = vsub.s32 %v434, %v436
    %v438 = vrot.slane %v430, %v437
    %v440 = vmul.f32 %v411, %v438
    %v441 = vmul.f32 %v412, %v438
    %v442 = vsub.f32 1.0, %v137
    %v444 = vlaneseq
    %v445 = vshrl.u32 %v444, 7
    %v446 = vsub.s32 0, %v445
    %v447 = vrot.slane %v442, %v446
    %v448 = vlaneseq
    %v449 = vshrl.u32 %v448, 7
    %v450 = vsub.s32 1, %v449
    %v451 = vrot.slane %v442, %v450
    %v452 = vlaneseq
    %v453 = vshrl.u32 %v452, 7
    %v454 = vsub.s32 2, %v453
    %v455 = vrot.slane %v442, %v454
    %v456 = vlaneseq
    %v457 = vshrl.u32 %v456, 7
    %v458 = vsub.s32 3, %v457
    %v459 = vrot.slane %v442, %v458
    %v460 = vcombine.low %v447, %v451
    %v461 = vcombine.low %v455, %v459
    %v462 = vrot.slane %v460, 7
    %v463 = vrot.slane %v461, 7
    %v466 = vmul.f32 %v440, %v462
    %v467 = vmul.f32 %v441, %v463
    %v470 = vlaneseq
    %v471 = vshrl.u32 %v470, 7
    %v472 = vsub.s32 0, %v471
    %v473 = vrot.slane %v135, %v472
    %v474 = vlaneseq
    %v475 = vshrl.u32 %v474, 7
    %v476 = vsub.s32 4, %v475
    %v477 = vrot.slane %v135, %v476
    %v478 = vlaneseq
    %v479 = vshrl.u32 %v478, 7
    %v480 = vsub.s32 0, %v479
    %v481 = vrot.slane %v136, %v480
    %v482 = vlaneseq
    %v483 = vshrl.u32 %v482, 7
    %v484 = vsub.s32 4, %v483
    %v485 = vrot.slane %v136, %v484
    %v490 = vlaneseq
    %v491 = vshrl.u32 %v490, 7
    %v492 = vsub.s32 0, %v491
    %v493 = vrot.slane %v473, %v492
    %v494 = vlaneseq
    %v495 = vshrl.u32 %v494, 7
    %v496 = vsub.s32 0, %v495
    %v497 = vrot.slane %v477, %v496
    %v498 = vlaneseq
    %v499 = vshrl.u32 %v498, 7
    %v500 = vsub.s32 0, %v499
    %v501 = vrot.slane %v481, %v500
    %v502 = vlaneseq
    %v503 = vshrl.u32 %v502, 7
    %v504 = vsub.s32 0, %v503
    %v505 = vrot.slane %v485, %v504
    %v510 = vcombine.low %v493, %v497
    %v511 = vcombine.low %v501, %v505
    %v512 = vrot.slane %v510, 7
    %v513 = vrot.slane %v511, 7
    %v516 = vsub.f32 %v135, %v512
    %v517 = vsub.f32 %v136, %v513
    %v518 = vmul.f32 %v516, %v516
    %v519 = vmul.f32 %v517, %v517
    %v522 = vcombine.high %v518, %v518
    %v523 = vcombine.high %v519, %v519
    %v526 = vsel %vm190, %v518, 0.0
    %v527 = vsel %vm190, %v522, 0.0
    %v528 = vadd.f32 %v526, %v527
    %v529 = vsel %vm190, %v519, 0.0
    %v530 = vadd.f32 %v528, %v529
    %v531 = vsel %vm190, %v523, 0.0
    %v532 = vadd.f32 %v530, %v531
    %533 = vadd.xlane.f32.xlu0 %v532
    %v534 = vpop.xlane.xlu0 %533
    %v535 = vrsqrt.pop %v534
    %v538 = vunpack.c.l.s4 839922192
    %v539 = vunpack.c.0.s8 %v538
    %v540 = vlaneseq
    %v541 = vshrl.u32 %v540, 7
    %v542 = vsub.s32 %v539, %v541
    %v543 = vrot.slane %v535, %v542
    %v545 = vmul.f32 %v516, %v543
    %v546 = vmul.f32 %v517, %v543
    %v547 = vmul.f32 %v545, %v462
    %v548 = vmul.f32 %v546, %v463
    %v550 = vlaneseq
    %v551 = vshrl.u32 %v550, 7
    %v552 = vsub.s32 0, %v551
    %v553 = vrot.slane %v137, %v552
    %v554 = vlaneseq
    %v555 = vshrl.u32 %v554, 7
    %v556 = vsub.s32 1, %v555
    %v557 = vrot.slane %v137, %v556
    %v558 = vlaneseq
    %v559 = vshrl.u32 %v558, 7
    %v560 = vsub.s32 2, %v559
    %v561 = vrot.slane %v137, %v560
    %v562 = vlaneseq
    %v563 = vshrl.u32 %v562, 7
    %v564 = vsub.s32 3, %v563
    %v565 = vrot.slane %v137, %v564
    %v570 = vsel %vm164, %v553, 0.0
    %v571 = vsel %vm164, %v557, 0.0
    %v572 = vadd.f32 %v570, %v571
    %v573 = vsel %vm164, %v561, 0.0
    %v574 = vadd.f32 %v572, %v573
    %v575 = vsel %vm164, %v565, 0.0
    %v576 = vadd.f32 %v574, %v575
    %577 = vadd.xlane.f32.xlu0 %v576
    %v578 = vpop.xlane.xlu0 %577
    %v579 = vmul.f32 %v466, %v466
    %v580 = vmul.f32 %v467, %v467
    %v583 = vcombine.high %v579, %v579
    %v584 = vcombine.high %v580, %v580
    %v587 = vsel %vm190, %v579, 0.0
    %v588 = vsel %vm190, %v583, 0.0
    %v589 = vadd.f32 %v587, %v588
    %v590 = vsel %vm190, %v580, 0.0
    %v591 = vadd.f32 %v589, %v590
    %v592 = vsel %vm190, %v584, 0.0
    %v593 = vadd.f32 %v591, %v592
    %594 = vadd.xlane.f32.xlu0 %v593
    %v595 = vpop.xlane.xlu0 %594
    %v596 = vrsqrt.pop %v595
    %v597 = vmul.f32 %v595, %v596
    %vm598 = vcmp.eq.f32.partialorder %v595, inf
    %v599 = vsel %vm598, %v595, %v597
    %vm600 = vcmp.eq.f32.partialorder %v595, 0.0
    %v601 = vand.u32 %v595, 2147483648
    %v602 = vsel %vm600, %v601, %v599
    %v603 = vmul.f32 %v547, %v547
    %v604 = vmul.f32 %v548, %v548
    %v607 = vcombine.high %v603, %v603
    %v608 = vcombine.high %v604, %v604
    %v611 = vsel %vm190, %v603, 0.0
    %v612 = vsel %vm190, %v607, 0.0
    %v613 = vadd.f32 %v611, %v612
    %v614 = vsel %vm190, %v604, 0.0
    %v615 = vadd.f32 %v613, %v614
    %v616 = vsel %vm190, %v608, 0.0
    %v617 = vadd.f32 %v615, %v616
    %618 = vadd.xlane.f32.xlu0 %v617
    %v619 = vpop.xlane.xlu0 %618
    %v620 = vrsqrt.pop %v619
    %v621 = vmul.f32 %v619, %v620
    %vm622 = vcmp.eq.f32.partialorder %v619, inf
    %v623 = vsel %vm622, %v619, %v621
    %vm624 = vcmp.eq.f32.partialorder %v619, 0.0
    %v625 = vand.u32 %v619, 2147483648
    %v626 = vsel %vm624, %v625, %v623
    %v627 = vmul.f32 %v466, %v547
    %v628 = vmul.f32 %v467, %v548
    %v631 = vcombine.high %v627, %v627
    %v632 = vcombine.high %v628, %v628
    %v635 = vsel %vm190, %v627, 0.0
    %v636 = vsel %vm190, %v631, 0.0
    %v637 = vadd.f32 %v635, %v636
    %v638 = vsel %vm190, %v628, 0.0
    %v639 = vadd.f32 %v637, %v638
    %v640 = vsel %vm190, %v632, 0.0
    %v641 = vadd.f32 %v639, %v640
    %642 = vadd.xlane.f32.xlu0 %v641
    %v643 = vpop.xlane.xlu0 %642
    %v644 = vmax.f32 %v602, 1e-08
    %v645 = vmax.f32 %v626, 1e-08
    %v646 = vmul.f32 %v644, %v645
    %v647 = vrcp.pop %v646
    %v648 = vmul.f32 %v643, %v647
    %v649 = vsub.f32 1.0, %v648
    %v651 = vrot.slane %v649, 1
    %v653 = vsel %vm330, %v651, 0.0
    %v654 = vrot.slane %v653, 4
    %v655 = vadd.f32 %v653, %v654
    %v656 = vrot.slane %v655, 2
    %v657 = vadd.f32 %v655, %v656
    %v658 = vrot.slane %v657, 1
    %v659 = vadd.f32 %v657, %v658
    %v660 = vmul.f32 %v659, %v361
    %v661 = vrcp.pop 512.0
    %v662 = vmul.f32 %v578, %v661
    %v663 = vsub.f32 1.0, %v662
    %v664 = vmul.f32 %v660, %v663
    %v665 = vmul.f32 %v664, 0.5
    %v666 = vadd.f32 %v362, %v665
    %vm667 = vcmask 0
    %668 = vst.msk [vmem:[#allocation2] sm:$0x1] %vm667, %v666
    // Predicated region
    $region18: #{forward.3} parent=1 // pred_check
      _
    $region19: #{forward.3} parent=1 // pred_check_branch
      %670 = sbr.rel (0) target = $region21
    $region20: #{forward.3} parent=1 // pred_region
      %s672 = ssub.s32 16, 16
      %673 = vsyncadd [#allocation3], %s672
      %s675 = sshll.u32 [#allocation2], 4
      %s676 = int_to_ptr.vmem [resolvable:$true] %s675
      %678 = dma.vmem_to_hbm [thread:$0]  %s676, 16, %s4, [#allocation3]
    $region21: #{forward.3} parent=1 // pred_fallthru
      _
    // Predicated region
    $region22: #{forward.3} parent=1 // pred_check
      _
    $region23: #{forward.3} parent=1 // pred_check_branch
      %680 = sbr.rel (0) target = $region25
    $region24: #{forward.3} parent=1 // pred_region
      %681 = dma.done [#allocation3], 16
    $region25: #{forward.3} parent=1 // pred_fallthru
      _
    %682 = vsyncpa [#allocation3], 1

// kernel: forward.2
$region0: #{forward.2}
  #allocation0 [shape = 'u32[]', space=smem, size = 0x4, offset = 0x4, fixed_abs, tag = 'smem constant byte address 0x4 - core index']
  #allocation1 [shape = 'u32[144,128]{1,0:T(1,128)}', space=vmem, size = 0x12000, scoped, tag = 'internal scratch']
  %s0 = inlined_call_operand.vmem [shape: f32[4,768], index: 0, kind: input, shape index: {}]
  %s1 = inlined_call_operand.vmem [shape: f32[4,768], index: 1, kind: input, shape index: {}]
  %s2 = inlined_call_operand.hbm [shape: s8[768,512], index: 2, kind: input, shape index: {}]
  %s3 = inlined_call_operand.vmem [shape: f32[1,2,4,512], index: 3, kind: output, shape index: {}]
  %s4 = sld [smem:[#allocation0]]
  $region30: #{forward.2} parent=0
    _
  %s6 = ssub.s32 1, %s4
  %s7 = scalar_select 0, %s6, %s4
  $region1: #{forward.2} parent=0
    #allocation2 [shape = 'u8[393216]{0}', space=vmem, size = 0x60000, scoped, tag = 'input window, operand 2, single buffered']
    #allocation3 [shape = 's32[1]{0}', space=sflag, size = 0x4, scoped, tag = 'scoped memory for forward.2']
    %8 = vsyncpa [#allocation3], 0
    // Predicated region
    $region2: #{forward.2} parent=1 // pred_check
      _
    $region3: #{forward.2} parent=1 // pred_check_branch
      %10 = sbr.rel (0) target = $region5
    $region4: #{forward.2} parent=1 // pred_region
      %s11 = sadd.s32 0, 0
      %s12 = smul.u32 6, %s11
      %p13 = scmp.lt.s32.totalorder %s12, 5
      %s14 = scalar_select %p13, %s12, 5
      %s15 = smul.addr %s14, 4
      %s16 = scalar_lea.vmem %s0, %s15
      %s17 = sadd.s32 0, 0
      %s18 = smul.u32 6, %s17
    $region5: #{forward.2} parent=1 // pred_fallthru
      _
    // Predicated region
    $region6: #{forward.2} parent=1 // pred_check
      _
    $region7: #{forward.2} parent=1 // pred_check_branch
      %20 = sbr.rel (0) target = $region9
    $region8: #{forward.2} parent=1 // pred_region
      %s21 = sadd.s32 0, 0
      %s22 = smul.u32 6, %s21
      %p23 = scmp.lt.s32.totalorder %s22, 5
      %s24 = scalar_select %p23, %s22, 5
      %s25 = smul.addr %s24, 4
      %s26 = scalar_lea.vmem %s1, %s25
      %s27 = sadd.s32 0, 0
      %s28 = smul.u32 6, %s27
    $region9: #{forward.2} parent=1 // pred_fallthru
      _
    // Predicated region
    $region10: #{forward.2} parent=1 // pred_check
      _
    $region11: #{forward.2} parent=1 // pred_check_branch
      %30 = sbr.rel (0) target = $region13
    $region12: #{forward.2} parent=1 // pred_region
      %s31 = sadd.s32 0, 0
      %s32 = smul.u32 24, %s31
      %s34 = ssub.s32 12288, 12288
      %35 = vsyncadd [#allocation3], %s34
      %s36 = smul.addr %s32, 4
      %s37 = smul.addr %s36, 128
      %s38 = scalar_lea.hbm %s2, %s37
      %s39 = sshll.u32 [#allocation2], 4
      %s40 = int_to_ptr.vmem [resolvable:$true] %s39
      %45 = dma.hbm_to_vmem [thread:$0]  %s38, 12288, %s40, [#allocation3], 512, 512, 32
    $region13: #{forward.2} parent=1 // pred_fallthru
      _
    // Predicated region
    $region14: #{forward.2} parent=1 // pred_check
      _
    $region15: #{forward.2} parent=1 // pred_check_branch
      %47 = sbr.rel (0) target = $region17
    $region16: #{forward.2} parent=1 // pred_region
      %48 = dma.done [#allocation3], 12288
    $region17: #{forward.2} parent=1 // pred_fallthru
      _
    %s49 = sadd.s32 0, 0
    %s50 = smul.u32 6, %s49
    %p51 = scmp.lt.s32.totalorder %s50, 5
    %s52 = scalar_select %p51, %s50, 5
    %s53 = smul.addr %s52, 4
    %s54 = scalar_lea.vmem %s0, %s53
    %s55 = sadd.s32 0, 0
    %s56 = smul.u32 6, %s55
    %p57 = scmp.lt.s32.totalorder %s56, 5
    %s58 = scalar_select %p57, %s56, 5
    %s59 = smul.addr %s58, 4
    %s60 = scalar_lea.vmem %s1, %s59
    %s61 = sadd.s32 0, 0
    %s62 = smul.u32 6, %s61
    %p63 = scmp.lt.s32.totalorder %s62, 5
    %s64 = scalar_select %p63, %s62, 5
    %s65 = smul.addr %s64, 4
    %s66 = scalar_lea.vmem %s0, %s65
    %s67 = sadd.s32 0, 0
    %s68 = smul.u32 6, %s67
    %s69 = sadd.s32 0, 0
    %s70 = smul.u32 6, %s69
    %p71 = scmp.lt.s32.totalorder %s70, 5
    %s72 = scalar_select %p71, %s70, 5
    %s73 = smul.addr %s72, 4
    %s74 = scalar_lea.vmem %s1, %s73
    %s75 = sadd.s32 0, 0
    %s76 = smul.u32 6, %s75
    %s77 = sadd.s32 0, 0
    %s78 = smul.u32 24, %s77
    %p79 = scmp.eq.s32.totalorder 0, 0
    // Predicated region
    $region18: #{forward.2} parent=1 // pred_check
      %p80 = pneg %p79
    $region19: #{forward.2} parent=1 // pred_check_branch
      %82 = sbr.rel (%p80) target = $region21
    $region20: #{forward.2} parent=1 // pred_region
      %83 = vst [vmem:[%s3] sm:$0xff] 0.0
      %84 = vst [vmem:[%s3 + $0x8] sm:$0xff] 0.0
      %85 = vst [vmem:[%s3 + $0x10] sm:$0xff] 0.0
      %86 = vst [vmem:[%s3 + $0x18] sm:$0xff] 0.0
    $region21: #{forward.2} parent=1 // pred_fallthru
      _
    %v87 = vld [vmem:[#allocation2] sm:$0xff]
    %v88 = vld [vmem:[#allocation2 + $0x8] sm:$0xff]
    %v89 = vld [vmem:[#allocation2 + $0x10] sm:$0xff]
    %v90 = vld [vmem:[#allocation2 + $0x18] sm:$0xff]
    %v91 = vld [vmem:[#allocation2 + $0x20] sm:$0xff]
    %v92 = vld [vmem:[#allocation2 + $0x28] sm:$0xff]
    %v93 = vld [vmem:[#allocation2 + $0x30] sm:$0xff]
    %v94 = vld [vmem:[#allocation2 + $0x38] sm:$0xff]
    %v95 = vld [vmem:[#allocation2 + $0x40] sm:$0xff]
    %v96 = vld [vmem:[#allocation2 + $0x48] sm:$0xff]
    %v97 = vld [vmem:[#allocation2 + $0x50] sm:$0xff]
    %v98 = vld [vmem:[#allocation2 + $0x58] sm:$0xff]
    %v99 = vld [vmem:[#allocation2 + $0x60] sm:$0xff]
    %v100 = vld [vmem:[#allocation2 + $0x68] sm:$0xff]
    %v101 = vld [vmem:[#allocation2 + $0x70] sm:$0xff]
    %v102 = vld [vmem:[#allocation2 + $0x78] sm:$0xff]
    %v103 = vld [vmem:[#allocation2 + $0x80] sm:$0xff]
    %v104 = vld [vmem:[#allocation2 + $0x88] sm:$0xff]
    %v105 = vld [vmem:[#allocation2 + $0x90] sm:$0xff]
    %v106 = vld [vmem:[#allocation2 + $0x98] sm:$0xff]
    %v107 = vld [vmem:[#allocation2 + $0xa0] sm:$0xff]
    %v108 = vld [vmem:[#allocation2 + $0xa8] sm:$0xff]
    %v109 = vld [vmem:[#allocation2 + $0xb0] sm:$0xff]
    %v110 = vld [vmem:[#allocation2 + $0xb8] sm:$0xff]
    %v111 = vld [vmem:[#allocation2 + $0xc0] sm:$0xff]
    %v112 = vld [vmem:[#allocation2 + $0xc8] sm:$0xff]
    %v113 = vld [vmem:[#allocation2 + $0xd0] sm:$0xff]
    %v114 = vld [vmem:[#allocation2 + $0xd8] sm:$0xff]
    %v115 = vld [vmem:[#allocation2 + $0xe0] sm:$0xff]
    %v116 = vld [vmem:[#allocation2 + $0xe8] sm:$0xff]
    %v117 = vld [vmem:[#allocation2 + $0xf0] sm:$0xff]
    %v118 = vld [vmem:[#allocation2 + $0xf8] sm:$0xff]
    %v119 = vld [vmem:[#allocation2 + $0x100] sm:$0xff]
    %v120 = vld [vmem:[#allocation2 + $0x108] sm:$0xff]
    %v121 = vld [vmem:[#allocation2 + $0x110] sm:$0xff]
    %v122 = vld [vmem:[#allocation2 + $0x118] sm:$0xff]
    %v123 = vld [vmem:[#allocation2 + $0x120] sm:$0xff]
    %v124 = vld [vmem:[#allocation2 + $0x128] sm:$0xff]
    %v125 = vld [vmem:[#allocation2 + $0x130] sm:$0xff]
    %v126 = vld [vmem:[#allocation2 + $0x138] sm:$0xff]
    %v127 = vld [vmem:[#allocation2 + $0x140] sm:$0xff]
    %v128 = vld [vmem:[#allocation2 + $0x148] sm:$0xff]
    %v129 = vld [vmem:[#allocation2 + $0x150] sm:$0xff]
    %v130 = vld [vmem:[#allocation2 + $0x158] sm:$0xff]
    %v131 = vld [vmem:[#allocation2 + $0x160] sm:$0xff]
    %v132 = vld [vmem:[#allocation2 + $0x168] sm:$0xff]
    %v133 = vld [vmem:[#allocation2 + $0x170] sm:$0xff]
    %v134 = vld [vmem:[#allocation2 + $0x178] sm:$0xff]
    %v135 = vld [vmem:[#allocation2 + $0x180] sm:$0xff]
    %v136 = vld [vmem:[#allocation2 + $0x188] sm:$0xff]
    %v137 = vld [vmem:[#allocation2 + $0x190] sm:$0xff]
    %v138 = vld [vmem:[#allocation2 + $0x198] sm:$0xff]
    %v139 = vld [vmem:[#allocation2 + $0x1a0] sm:$0xff]
    %v140 = vld [vmem:[#allocation2 + $0x1a8] sm:$0xff]
    %v141 = vld [vmem:[#allocation2 + $0x1b0] sm:$0xff]
    %v142 = vld [vmem:[#allocation2 + $0x1b8] sm:$0xff]
    %v143 = vld [vmem:[#allocation2 + $0x1c0] sm:$0xff]
    %v144 = vld [vmem:[#allocation2 + $0x1c8] sm:$0xff]
    %v145 = vld [vmem:[#allocation2 + $0x1d0] sm:$0xff]
    %v146 = vld [vmem:[#allocation2 + $0x1d8] sm:$0xff]
    %v147 = vld [vmem:[#allocation2 + $0x1e0] sm:$0xff]
    %v148 = vld [vmem:[#allocation2 + $0x1e8] sm:$0xff]
    %v149 = vld [vmem:[#allocation2 + $0x1f0] sm:$0xff]
    %v150 = vld [vmem:[#allocation2 + $0x1f8] sm:$0xff]
    %v151 = vld [vmem:[#allocation2 + $0x200] sm:$0xff]
    %v152 = vld [vmem:[#allocation2 + $0x208] sm:$0xff]
    %v153 = vld [vmem:[#allocation2 + $0x210] sm:$0xff]
    %v154 = vld [vmem:[#allocation2 + $0x218] sm:$0xff]
    %v155 = vld [vmem:[#allocation2 + $0x220] sm:$0xff]
    %v156 = vld [vmem:[#allocation2 + $0x228] sm:$0xff]
    %v157 = vld [vmem:[#allocation2 + $0x230] sm:$0xff]
    %v158 = vld [vmem:[#allocation2 + $0x238] sm:$0xff]
    %v159 = vld [vmem:[#allocation2 + $0x240] sm:$0xff]
    %v160 = vld [vmem:[#allocation2 + $0x248] sm:$0xff]
    %v161 = vld [vmem:[#allocation2 + $0x250] sm:$0xff]
    %v162 = vld [vmem:[#allocation2 + $0x258] sm:$0xff]
    %v163 = vld [vmem:[#allocation2 + $0x260] sm:$0xff]
    %v164 = vld [vmem:[#allocation2 + $0x268] sm:$0xff]
    %v165 = vld [vmem:[#allocation2 + $0x270] sm:$0xff]
    %v166 = vld [vmem:[#allocation2 + $0x278] sm:$0xff]
    %v167 = vld [vmem:[#allocation2 + $0x280] sm:$0xff]
    %v168 = vld [vmem:[#allocation2 + $0x288] sm:$0xff]
    %v169 = vld [vmem:[#allocation2 + $0x290] sm:$0xff]
    %v170 = vld [vmem:[#allocation2 + $0x298] sm:$0xff]
    %v171 = vld [vmem:[#allocation2 + $0x2a0] sm:$0xff]
    %v172 = vld [vmem:[#allocation2 + $0x2a8] sm:$0xff]
    %v173 = vld [vmem:[#allocation2 + $0x2b0] sm:$0xff]
    %v174 = vld [vmem:[#allocation2 + $0x2b8] sm:$0xff]
    %v175 = vld [vmem:[#allocation2 + $0x2c0] sm:$0xff]
    %v176 = vld [vmem:[#allocation2 + $0x2c8] sm:$0xff]
    %v177 = vld [vmem:[#allocation2 + $0x2d0] sm:$0xff]
    %v178 = vld [vmem:[#allocation2 + $0x2d8] sm:$0xff]
    %v179 = vld [vmem:[#allocation2 + $0x2e0] sm:$0xff]
    %v180 = vld [vmem:[#allocation2 + $0x2e8] sm:$0xff]
    %v181 = vld [vmem:[#allocation2 + $0x2f0] sm:$0xff]
    %v182 = vld [vmem:[#allocation2 + $0x2f8] sm:$0xff]
    %v183 = vunpack.c.l.s8.bf16 %v87
    %v184 = vunpack.c.l.s8.bf16 %v88
    %v185 = vunpack.c.l.s8.bf16 %v89
    %v186 = vunpack.c.l.s8.bf16 %v90
    %v187 = vunpack.c.h.s8.bf16 %v87
    %v188 = vunpack.c.h.s8.bf16 %v88
    %v189 = vunpack.c.h.s8.bf16 %v89
    %v190 = vunpack.c.h.s8.bf16 %v90
    %v191 = vunpack.c.l.s8.bf16 %v91
    %v192 = vunpack.c.l.s8.bf16 %v92
    %v193 = vunpack.c.l.s8.bf16 %v93
    %v194 = vunpack.c.l.s8.bf16 %v94
    %v195 = vunpack.c.h.s8.bf16 %v91
    %v196 = vunpack.c.h.s8.bf16 %v92
    %v197 = vunpack.c.h.s8.bf16 %v93
    %v198 = vunpack.c.h.s8.bf16 %v94
    %v199 = vunpack.c.l.s8.bf16 %v95
    %v200 = vunpack.c.l.s8.bf16 %v96
    %v201 = vunpack.c.l.s8.bf16 %v97
    %v202 = vunpack.c.l.s8.bf16 %v98
    %v203 = vunpack.c.h.s8.bf16 %v95
    %v204 = vunpack.c.h.s8.bf16 %v96
    %v205 = vunpack.c.h.s8.bf16 %v97
    %v206 = vunpack.c.h.s8.bf16 %v98
    %v207 = vunpack.c.l.s8.bf16 %v99
    %v208 = vunpack.c.l.s8.bf16 %v100
    %v209 = vunpack.c.l.s8.bf16 %v101
    %v210 = vunpack.c.l.s8.bf16 %v102
    %v211 = vunpack.c.h.s8.bf16 %v99
    %v212 = vunpack.c.h.s8.bf16 %v100
    %v213 = vunpack.c.h.s8.bf16 %v101
    %v214 = vunpack.c.h.s8.bf16 %v102
    %v215 = vunpack.c.l.s8.bf16 %v103
    %v216 = vunpack.c.l.s8.bf16 %v104
    %v217 = vunpack.c.l.s8.bf16 %v105
    %v218 = vunpack.c.l.s8.bf16 %v106
    %v219 = vunpack.c.h.s8.bf16 %v103
    %v220 = vunpack.c.h.s8.bf16 %v104
    %v221 = vunpack.c.h.s8.bf16 %v105
    %v222 = vunpack.c.h.s8.bf16 %v106
    %v223 = vunpack.c.l.s8.bf16 %v107
    %v224 = vunpack.c.l.s8.bf16 %v108
    %v225 = vunpack.c.l.s8.bf16 %v109
    %v226 = vunpack.c.l.s8.bf16 %v110
    %v227 = vunpack.c.h.s8.bf16 %v107
    %v228 = vunpack.c.h.s8.bf16 %v108
    %v229 = vunpack.c.h.s8.bf16 %v109
    %v230 = vunpack.c.h.s8.bf16 %v110
    %v231 = vunpack.c.l.s8.bf16 %v111
    %v232 = vunpack.c.l.s8.bf16 %v112
    %v233 = vunpack.c.l.s8.bf16 %v113
    %v234 = vunpack.c.l.s8.bf16 %v114
    %v235 = vunpack.c.h.s8.bf16 %v111
    %v236 = vunpack.c.h.s8.bf16 %v112
    %v237 = vunpack.c.h.s8.bf16 %v113
    %v238 = vunpack.c.h.s8.bf16 %v114
    %v239 = vunpack.c.l.s8.bf16 %v115
    %v240 = vunpack.c.l.s8.bf16 %v116
    %v241 = vunpack.c.l.s8.bf16 %v117
    %v242 = vunpack.c.l.s8.bf16 %v118
    %v243 = vunpack.c.h.s8.bf16 %v115
    %v244 = vunpack.c.h.s8.bf16 %v116
    %v245 = vunpack.c.h.s8.bf16 %v117
    %v246 = vunpack.c.h.s8.bf16 %v118
    %v247 = vunpack.c.l.s8.bf16 %v119
    %v248 = vunpack.c.l.s8.bf16 %v120
    %v249 = vunpack.c.l.s8.bf16 %v121
    %v250 = vunpack.c.l.s8.bf16 %v122
    %v251 = vunpack.c.h.s8.bf16 %v119
    %v252 = vunpack.c.h.s8.bf16 %v120
    %v253 = vunpack.c.h.s8.bf16 %v121
    %v254 = vunpack.c.h.s8.bf16 %v122
    %v255 = vunpack.c.l.s8.bf16 %v123
    %v256 = vunpack.c.l.s8.bf16 %v124
    %v257 = vunpack.c.l.s8.bf16 %v125
    %v258 = vunpack.c.l.s8.bf16 %v126
    %v259 = vunpack.c.h.s8.bf16 %v123
    %v260 = vunpack.c.h.s8.bf16 %v124
    %v261 = vunpack.c.h.s8.bf16 %v125
    %v262 = vunpack.c.h.s8.bf16 %v126
    %v263 = vunpack.c.l.s8.bf16 %v127
    %v264 = vunpack.c.l.s8.bf16 %v128
    %v265 = vunpack.c.l.s8.bf16 %v129
    %v266 = vunpack.c.l.s8.bf16 %v130
    %v267 = vunpack.c.h.s8.bf16 %v127
    %v268 = vunpack.c.h.s8.bf16 %v128
    %v269 = vunpack.c.h.s8.bf16 %v129
    %v270 = vunpack.c.h.s8.bf16 %v130
    %v271 = vunpack.c.l.s8.bf16 %v131
    %v272 = vunpack.c.l.s8.bf16 %v132
    %v273 = vunpack.c.l.s8.bf16 %v133
    %v274 = vunpack.c.l.s8.bf16 %v134
    %v275 = vunpack.c.h.s8.bf16 %v131
    %v276 = vunpack.c.h.s8.bf16 %v132
    %v277 = vunpack.c.h.s8.bf16 %v133
    %v278 = vunpack.c.h.s8.bf16 %v134
    %v279 = vunpack.c.l.s8.bf16 %v135
    %v280 = vunpack.c.l.s8.bf16 %v136
    %v281 = vunpack.c.l.s8.bf16 %v137
    %v282 = vunpack.c.l.s8.bf16 %v138
    %v283 = vunpack.c.h.s8.bf16 %v135
    %v284 = vunpack.c.h.s8.bf16 %v136
    %v285 = vunpack.c.h.s8.bf16 %v137
    %v286 = vunpack.c.h.s8.bf16 %v138
    %v287 = vunpack.c.l.s8.bf16 %v139
    %v288 = vunpack.c.l.s8.bf16 %v140
    %v289 = vunpack.c.l.s8.bf16 %v141
    %v290 = vunpack.c.l.s8.bf16 %v142
    %v291 = vunpack.c.h.s8.bf16 %v139
    %v292 = vunpack.c.h.s8.bf16 %v140
    %v293 = vunpack.c.h.s8.bf16 %v141
    %v294 = vunpack.c.h.s8.bf16 %v142
    %v295 = vunpack.c.l.s8.bf16 %v143
    %v296 = vunpack.c.l.s8.bf16 %v144
    %v297 = vunpack.c.l.s8.bf16 %v145
    %v298 = vunpack.c.l.s8.bf16 %v146
    %v299 = vunpack.c.h.s8.bf16 %v143
    %v300 = vunpack.c.h.s8.bf16 %v144
    %v301 = vunpack.c.h.s8.bf16 %v145
    %v302 = vunpack.c.h.s8.bf16 %v146
    %v303 = vunpack.c.l.s8.bf16 %v147
    %v304 = vunpack.c.l.s8.bf16 %v148
    %v305 = vunpack.c.l.s8.bf16 %v149
    %v306 = vunpack.c.l.s8.bf16 %v150
    %v307 = vunpack.c.h.s8.bf16 %v147
    %v308 = vunpack.c.h.s8.bf16 %v148
    %v309 = vunpack.c.h.s8.bf16 %v149
    %v310 = vunpack.c.h.s8.bf16 %v150
    %v311 = vunpack.c.l.s8.bf16 %v151
    %v312 = vunpack.c.l.s8.bf16 %v152
    %v313 = vunpack.c.l.s8.bf16 %v153
    %v314 = vunpack.c.l.s8.bf16 %v154
    %v315 = vunpack.c.h.s8.bf16 %v151
    %v316 = vunpack.c.h.s8.bf16 %v152
    %v317 = vunpack.c.h.s8.bf16 %v153
    %v318 = vunpack.c.h.s8.bf16 %v154
    %v319 = vunpack.c.l.s8.bf16 %v155
    %v320 = vunpack.c.l.s8.bf16 %v156
    %v321 = vunpack.c.l.s8.bf16 %v157
    %v322 = vunpack.c.l.s8.bf16 %v158
    %v323 = vunpack.c.h.s8.bf16 %v155
    %v324 = vunpack.c.h.s8.bf16 %v156
    %v325 = vunpack.c.h.s8.bf16 %v157
    %v326 = vunpack.c.h.s8.bf16 %v158
    %v327 = vunpack.c.l.s8.bf16 %v159
    %v328 = vunpack.c.l.s8.bf16 %v160
    %v329 = vunpack.c.l.s8.bf16 %v161
    %v330 = vunpack.c.l.s8.bf16 %v162
    %v331 = vunpack.c.h.s8.bf16 %v159
    %v332 = vunpack.c.h.s8.bf16 %v160
    %v333 = vunpack.c.h.s8.bf16 %v161
    %v334 = vunpack.c.h.s8.bf16 %v162
    %v335 = vunpack.c.l.s8.bf16 %v163
    %v336 = vunpack.c.l.s8.bf16 %v164
    %v337 = vunpack.c.l.s8.bf16 %v165
    %v338 = vunpack.c.l.s8.bf16 %v166
    %v339 = vunpack.c.h.s8.bf16 %v163
    %v340 = vunpack.c.h.s8.bf16 %v164
    %v341 = vunpack.c.h.s8.bf16 %v165
    %v342 = vunpack.c.h.s8.bf16 %v166
    %v343 = vunpack.c.l.s8.bf16 %v167
    %v344 = vunpack.c.l.s8.bf16 %v168
    %v345 = vunpack.c.l.s8.bf16 %v169
    %v346 = vunpack.c.l.s8.bf16 %v170
    %v347 = vunpack.c.h.s8.bf16 %v167
    %v348 = vunpack.c.h.s8.bf16 %v168
    %v349 = vunpack.c.h.s8.bf16 %v169
    %v350 = vunpack.c.h.s8.bf16 %v170
    %v351 = vunpack.c.l.s8.bf16 %v171
    %v352 = vunpack.c.l.s8.bf16 %v172
    %v353 = vunpack.c.l.s8.bf16 %v173
    %v354 = vunpack.c.l.s8.bf16 %v174
    %v355 = vunpack.c.h.s8.bf16 %v171
    %v356 = vunpack.c.h.s8.bf16 %v172
    %v357 = vunpack.c.h.s8.bf16 %v173
    %v358 = vunpack.c.h.s8.bf16 %v174
    %v359 = vunpack.c.l.s8.bf16 %v175
    %v360 = vunpack.c.l.s8.bf16 %v176
    %v361 = vunpack.c.l.s8.bf16 %v177
    %v362 = vunpack.c.l.s8.bf16 %v178
    %v363 = vunpack.c.h.s8.bf16 %v175
    %v364 = vunpack.c.h.s8.bf16 %v176
    %v365 = vunpack.c.h.s8.bf16 %v177
    %v366 = vunpack.c.h.s8.bf16 %v178
    %v367 = vunpack.c.l.s8.bf16 %v179
    %v368 = vunpack.c.l.s8.bf16 %v180
    %v369 = vunpack.c.l.s8.bf16 %v181
    %v370 = vunpack.c.l.s8.bf16 %v182
    %v371 = vunpack.c.h.s8.bf16 %v179
    %v372 = vunpack.c.h.s8.bf16 %v180
    %v373 = vunpack.c.h.s8.bf16 %v181
    %v374 = vunpack.c.h.s8.bf16 %v182
    %v375 = vld [vmem:[%s3] sm:$0xff]
    %v376 = vld [vmem:[%s3 + $0x8] sm:$0xff]
    %v377 = vld [vmem:[%s66] sm:$0xff]
    %v378 = vld [vmem:[%s66 + $0x8] sm:$0xff]
    %v379 = vld [vmem:[%s66 + $0x10] sm:$0xff]
    %v383 = vcombine.high %v377, %v377
    %v384 = vcombine.high %v378, %v378
    %v385 = vcombine.high %v379, %v379
    %v389 = vpack.c.bf16 %v377, %v377
    %v390 = vpack.c.bf16 %v383, %v383
    %v391 = vpack.c.bf16 %v378, %v378
    %v392 = vpack.c.bf16 %v384, %v384
    %v393 = vpack.c.bf16 %v379, %v379
    %v394 = vpack.c.bf16 %v385, %v385
    %395 = vmatprep.subr.bf16.mxu0 %v212
    %396 = vmatpush1.bf16.msra.mxu0 %v211
    %397 = vmatprep.subr.bf16.mxu0 %v208
    %398 = vmatpush1.bf16.msra.mxu0 %v207
    %399 = vmatprep.subr.bf16.mxu0 %v204
    %400 = vmatpush1.bf16.msra.mxu0 %v203
    %401 = vmatprep.subr.bf16.mxu0 %v200
    %402 = vmatpush1.bf16.msra.mxu0 %v199
    %403 = vmatprep.subr.bf16.mxu0 %v196
    %404 = vmatpush1.bf16.msra.mxu0 %v195
    %405 = vmatprep.subr.bf16.mxu0 %v192
    %406 = vmatpush1.bf16.msra.mxu0 %v191
    %407 = vmatprep.subr.bf16.mxu0 %v188
    %408 = vmatpush1.bf16.msra.mxu0 %v187
    %409 = vmatprep.subr.bf16.mxu0 %v184
    %410 = vmatpush1.bf16.msra.mxu0 %v183
    %411 = vmatprep.subr.bf16.mxu0 %v244
    %412 = vmatpush2.bf16.msra.mxu0 %v243
    %413 = vmatprep.subr.bf16.mxu0 %v240
    %414 = vmatpush2.bf16.msra.mxu0 %v239
    %415 = vmatprep.subr.bf16.mxu0 %v236
    %416 = vmatpush2.bf16.msra.mxu0 %v235
    %417 = vmatprep.subr.bf16.mxu0 %v232
    %418 = vmatpush2.bf16.msra.mxu0 %v231
    %419 = vmatprep.subr.bf16.mxu0 %v228
    %420 = vmatpush2.bf16.msra.mxu0 %v227
    %421 = vmatprep.subr.bf16.mxu0 %v224
    %422 = vmatpush2.bf16.msra.mxu0 %v223
    %423 = vmatprep.subr.bf16.mxu0 %v220
    %424 = vmatpush2.bf16.msra.mxu0 %v219
    %425 = vmatprep.subr.bf16.mxu0 %v216
    %426 = vmatpush2.bf16.msra.mxu0 %v215
    %427 = vmatprep.mubr.bf16.mxu0 %v390
    %428 = vmatmul.mubr.bf16.gmra.mxu0 %v389
    %v429 = vpop.f32.mrf.mxu0
    %v430 = vadd.f32 0.0, %v429
    %v431 = vpop.f32.mrf.mxu0
    %v432 = vadd.f32 0.0, %v431
    %v433 = vpop.f32.mrf.mxu0
    %v434 = vpop.f32.mrf.mxu0
    %435 = vdwg.mxu0
    %436 = vmatprep.subr.bf16.mxu0 %v276
    %437 = vmatpush1.bf16.msra.mxu0 %v275
    %438 = vmatprep.subr.bf16.mxu0 %v272
    %439 = vmatpush1.bf16.msra.mxu0 %v271
    %440 = vmatprep.subr.bf16.mxu0 %v268
    %441 = vmatpush1.bf16.msra.mxu0 %v267
    %442 = vmatprep.subr.bf16.mxu0 %v264
    %443 = vmatpush1.bf16.msra.mxu0 %v263
    %444 = vmatprep.subr.bf16.mxu0 %v260
    %445 = vmatpush1.bf16.msra.mxu0 %v259
    %446 = vmatprep.subr.bf16.mxu0 %v256
    %447 = vmatpush1.bf16.msra.mxu0 %v255
    %448 = vmatprep.subr.bf16.mxu0 %v252
    %449 = vmatpush1.bf16.msra.mxu0 %v251
    %450 = vmatprep.subr.bf16.mxu0 %v248
    %451 = vmatpush1.bf16.msra.mxu0 %v247
    %452 = vmatprep.subr.bf16.mxu0 %v308
    %453 = vmatpush2.bf16.msra.mxu0 %v307
    %454 = vmatprep.subr.bf16.mxu0 %v304
    %455 = vmatpush2.bf16.msra.mxu0 %v303
    %456 = vmatprep.subr.bf16.mxu0 %v300
    %457 = vmatpush2.bf16.msra.mxu0 %v299
    %458 = vmatprep.subr.bf16.mxu0 %v296
    %459 = vmatpush2.bf16.msra.mxu0 %v295
    %460 = vmatprep.subr.bf16.mxu0 %v292
    %461 = vmatpush2.bf16.msra.mxu0 %v291
    %462 = vmatprep.subr.bf16.mxu0 %v288
    %463 = vmatpush2.bf16.msra.mxu0 %v287
    %464 = vmatprep.subr.bf16.mxu0 %v284
    %465 = vmatpush2.bf16.msra.mxu0 %v283
    %466 = vmatprep.subr.bf16.mxu0 %v280
    %467 = vmatpush2.bf16.msra.mxu0 %v279
    %468 = vmatprep.mubr.bf16.mxu0 %v392
    %469 = vmatmul.mubr.bf16.gmra.mxu0 %v391
    %v470 = vpop.f32.mrf.mxu0
    %v471 = vadd.f32 %v430, %v470
    %v472 = vpop.f32.mrf.mxu0
    %v473 = vadd.f32 %v432, %v472
    %v474 = vpop.f32.mrf.mxu0
    %v475 = vpop.f32.mrf.mxu0
    %476 = vdwg.mxu0
    %477 = vmatprep.subr.bf16.mxu0 %v340
    %478 = vmatpush1.bf16.msra.mxu0 %v339
    %479 = vmatprep.subr.bf16.mxu0 %v336
    %480 = vmatpush1.bf16.msra.mxu0 %v335
    %481 = vmatprep.subr.bf16.mxu0 %v332
    %482 = vmatpush1.bf16.msra.mxu0 %v331
    %483 = vmatprep.subr.bf16.mxu0 %v328
    %484 = vmatpush1.bf16.msra.mxu0 %v327
    %485 = vmatprep.subr.bf16.mxu0 %v324
    %486 = vmatpush1.bf16.msra.mxu0 %v323
    %487 = vmatprep.subr.bf16.mxu0 %v320
    %488 = vmatpush1.bf16.msra.mxu0 %v319
    %489 = vmatprep.subr.bf16.mxu0 %v316
    %490 = vmatpush1.bf16.msra.mxu0 %v315
    %491 = vmatprep.subr.bf16.mxu0 %v312
    %492 = vmatpush1.bf16.msra.mxu0 %v311
    %493 = vmatprep.subr.bf16.mxu0 %v372
    %494 = vmatpush2.bf16.msra.mxu0 %v371
    %495 = vmatprep.subr.bf16.mxu0 %v368
    %496 = vmatpush2.bf16.msra.mxu0 %v367
    %497 = vmatprep.subr.bf16.mxu0 %v364
    %498 = vmatpush2.bf16.msra.mxu0 %v363
    %499 = vmatprep.subr.bf16.mxu0 %v360
    %500 = vmatpush2.bf16.msra.mxu0 %v359
    %501 = vmatprep.subr.bf16.mxu0 %v356
    %502 = vmatpush2.bf16.msra.mxu0 %v355
    %503 = vmatprep.subr.bf16.mxu0 %v352
    %504 = vmatpush2.bf16.msra.mxu0 %v351
    %505 = vmatprep.subr.bf16.mxu0 %v348
    %506 = vmatpush2.bf16.msra.mxu0 %v347
    %507 = vmatprep.subr.bf16.mxu0 %v344
    %508 = vmatpush2.bf16.msra.mxu0 %v343
    %509 = vmatprep.mubr.bf16.mxu0 %v394
    %510 = vmatmul.mubr.bf16.gmra.mxu0 %v393
    %v511 = vpop.f32.mrf.mxu0
    %v512 = vadd.f32 %v471, %v511
    %v513 = vpop.f32.mrf.mxu0
    %v514 = vadd.f32 %v473, %v513
    %v515 = vpop.f32.mrf.mxu0
    %v516 = vpop.f32.mrf.mxu0
    %517 = vdwg.mxu0
    %518 = vmatprep.subr.bf16.mxu0 %v214
    %519 = vmatpush1.bf16.msra.mxu0 %v213
    %520 = vmatprep.subr.bf16.mxu0 %v210
    %521 = vmatpush1.bf16.msra.mxu0 %v209
    %522 = vmatprep.subr.bf16.mxu0 %v206
    %523 = vmatpush1.bf16.msra.mxu0 %v205
    %524 = vmatprep.subr.bf16.mxu0 %v202
    %525 = vmatpush1.bf16.msra.mxu0 %v201
    %526 = vmatprep.subr.bf16.mxu0 %v198
    %527 = vmatpush1.bf16.msra.mxu0 %v197
    %528 = vmatprep.subr.bf16.mxu0 %v194
    %529 = vmatpush1.bf16.msra.mxu0 %v193
    %530 = vmatprep.subr.bf16.mxu0 %v190
    %531 = vmatpush1.bf16.msra.mxu0 %v189
    %532 = vmatprep.subr.bf16.mxu0 %v186
    %533 = vmatpush1.bf16.msra.mxu0 %v185
    %534 = vmatprep.subr.bf16.mxu0 %v246
    %535 = vmatpush2.bf16.msra.mxu0 %v245
    %536 = vmatprep.subr.bf16.mxu0 %v242
    %537 = vmatpush2.bf16.msra.mxu0 %v241
    %538 = vmatprep.subr.bf16.mxu0 %v238
    %539 = vmatpush2.bf16.msra.mxu0 %v237
    %540 = vmatprep.subr.bf16.mxu0 %v234
    %541 = vmatpush2.bf16.msra.mxu0 %v233
    %542 = vmatprep.subr.bf16.mxu0 %v230
    %543 = vmatpush2.bf16.msra.mxu0 %v229
    %544 = vmatprep.subr.bf16.mxu0 %v226
    %545 = vmatpush2.bf16.msra.mxu0 %v225
    %546 = vmatprep.subr.bf16.mxu0 %v222
    %547 = vmatpush2.bf16.msra.mxu0 %v221
    %548 = vmatprep.subr.bf16.mxu0 %v218
    %549 = vmatpush2.bf16.msra.mxu0 %v217
    %550 = vmatprep.mubr.bf16.mxu0 %v390
    %551 = vmatmul.mubr.bf16.gmra.mxu0 %v389
    %v552 = vpop.f32.mrf.mxu0
    %v553 = vadd.f32 0.0, %v552
    %v554 = vpop.f32.mrf.mxu0
    %v555 = vadd.f32 0.0, %v554
    %v556 = vpop.f32.mrf.mxu0
    %v557 = vpop.f32.mrf.mxu0
    %558 = vdwg.mxu0
    %559 = vmatprep.subr.bf16.mxu0 %v278
    %560 = vmatpush1.bf16.msra.mxu0 %v277
    %561 = vmatprep.subr.bf16.mxu0 %v274
    %562 = vmatpush1.bf16.msra.mxu0 %v273
    %563 = vmatprep.subr.bf16.mxu0 %v270
    %564 = vmatpush1.bf16.msra.mxu0 %v269
    %565 = vmatprep.subr.bf16.mxu0 %v266
    %566 = vmatpush1.bf16.msra.mxu0 %v265
    %567 = vmatprep.subr.bf16.mxu0 %v262
    %568 = vmatpush1.bf16.msra.mxu0 %v261
    %569 = vmatprep.subr.bf16.mxu0 %v258
    %570 = vmatpush1.bf16.msra.mxu0 %v257
    %571 = vmatprep.subr.bf16.mxu0 %v254
    %572 = vmatpush1.bf16.msra.mxu0 %v253
    %573 = vmatprep.subr.bf16.mxu0 %v250
    %574 = vmatpush1.bf16.msra.mxu0 %v249
    %575 = vmatprep.subr.bf16.mxu0 %v310
    %576 = vmatpush2.bf16.msra.mxu0 %v309
    %577 = vmatprep.subr.bf16.mxu0 %v306
    %578 = vmatpush2.bf16.msra.mxu0 %v305
    %579 = vmatprep.subr.bf16.mxu0 %v302
    %580 = vmatpush2.bf16.msra.mxu0 %v301
    %581 = vmatprep.subr.bf16.mxu0 %v298
    %582 = vmatpush2.bf16.msra.mxu0 %v297
    %583 = vmatprep.subr.bf16.mxu0 %v294
    %584 = vmatpush2.bf16.msra.mxu0 %v293
    %585 = vmatprep.subr.bf16.mxu0 %v290
    %586 = vmatpush2.bf16.msra.mxu0 %v289
    %587 = vmatprep.subr.bf16.mxu0 %v286
    %588 = vmatpush2.bf16.msra.mxu0 %v285
    %589 = vmatprep.subr.bf16.mxu0 %v282
    %590 = vmatpush2.bf16.msra.mxu0 %v281
    %591 = vmatprep.mubr.bf16.mxu0 %v392
    %592 = vmatmul.mubr.bf16.gmra.mxu0 %v391
    %v593 = vpop.f32.mrf.mxu0
    %v594 = vadd.f32 %v553, %v593
    %v595 = vpop.f32.mrf.mxu0
    %v596 = vadd.f32 %v555, %v595
    %v597 = vpop.f32.mrf.mxu0
    %v598 = vpop.f32.mrf.mxu0
    %599 = vdwg.mxu0
    %600 = vmatprep.subr.bf16.mxu0 %v342
    %601 = vmatpush1.bf16.msra.mxu0 %v341
    %602 = vmatprep.subr.bf16.mxu0 %v338
    %603 = vmatpush1.bf16.msra.mxu0 %v337
    %604 = vmatprep.subr.bf16.mxu0 %v334
    %605 = vmatpush1.bf16.msra.mxu0 %v333
    %606 = vmatprep.subr.bf16.mxu0 %v330
    %607 = vmatpush1.bf16.msra.mxu0 %v329
    %608 = vmatprep.subr.bf16.mxu0 %v326
    %609 = vmatpush1.bf16.msra.mxu0 %v325
    %610 = vmatprep.subr.bf16.mxu0 %v322
    %611 = vmatpush1.bf16.msra.mxu0 %v321
    %612 = vmatprep.subr.bf16.mxu0 %v318
    %613 = vmatpush1.bf16.msra.mxu0 %v317
    %614 = vmatprep.subr.bf16.mxu0 %v314
    %615 = vmatpush1.bf16.msra.mxu0 %v313
    %616 = vmatprep.subr.bf16.mxu0 %v374
    %617 = vmatpush2.bf16.msra.mxu0 %v373
    %618 = vmatprep.subr.bf16.mxu0 %v370
    %619 = vmatpush2.bf16.msra.mxu0 %v369
    %620 = vmatprep.subr.bf16.mxu0 %v366
    %621 = vmatpush2.bf16.msra.mxu0 %v365
    %622 = vmatprep.subr.bf16.mxu0 %v362
    %623 = vmatpush2.bf16.msra.mxu0 %v361
    %624 = vmatprep.subr.bf16.mxu0 %v358
    %625 = vmatpush2.bf16.msra.mxu0 %v357
    %626 = vmatprep.subr.bf16.mxu0 %v354
    %627 = vmatpush2.bf16.msra.mxu0 %v353
    %628 = vmatprep.subr.bf16.mxu0 %v350
    %629 = vmatpush2.bf16.msra.mxu0 %v349
    %630 = vmatprep.subr.bf16.mxu0 %v346
    %631 = vmatpush2.bf16.msra.mxu0 %v345
    %632 = vmatprep.mubr.bf16.mxu0 %v394
    %633 = vmatmul.mubr.bf16.gmra.mxu0 %v393
    %v634 = vpop.f32.mrf.mxu0
    %v635 = vadd.f32 %v594, %v634
    %v636 = vpop.f32.mrf.mxu0
    %v637 = vadd.f32 %v596, %v636
    %v638 = vpop.f32.mrf.mxu0
    %v639 = vpop.f32.mrf.mxu0
    %640 = vdwg.mxu0
    %v645 = vcombine.low %v512, %v514
    %v646 = vcombine.low %v635, %v637
    %v649 = vadd.f32 %v375, %v645
    %v650 = vadd.f32 %v376, %v646
    %651 = vst [vmem:[%s3] sm:$0xff] %v649
    %652 = vst [vmem:[%s3 + $0x8] sm:$0xff] %v650
    %s653 = scalar_lea.vmem %s3, 16
    %v654 = vld [vmem:[%s653] sm:$0xff]
    %v655 = vld [vmem:[%s653 + $0x8] sm:$0xff]
    %v656 = vld [vmem:[%s74] sm:$0xff]
    %v657 = vld [vmem:[%s74 + $0x8] sm:$0xff]
    %v658 = vld [vmem:[%s74 + $0x10] sm:$0xff]
    %v662 = vcombine.high %v656, %v656
    %v663 = vcombine.high %v657, %v657
    %v664 = vcombine.high %v658, %v658
    %v668 = vpack.c.bf16 %v656, %v656
    %v669 = vpack.c.bf16 %v662, %v662
    %v670 = vpack.c.bf16 %v657, %v657
    %v671 = vpack.c.bf16 %v663, %v663
    %v672 = vpack.c.bf16 %v658, %v658
    %v673 = vpack.c.bf16 %v664, %v664
    %674 = vmatprep.subr.bf16.mxu0 %v212
    %675 = vmatpush1.bf16.msra.mxu0 %v211
    %676 = vmatprep.subr.bf16.mxu0 %v208
    %677 = vmatpush1.bf16.msra.mxu0 %v207
    %678 = vmatprep.subr.bf16.mxu0 %v204
    %679 = vmatpush1.bf16.msra.mxu0 %v203
    %680 = vmatprep.subr.bf16.mxu0 %v200
    %681 = vmatpush1.bf16.msra.mxu0 %v199
    %682 = vmatprep.subr.bf16.mxu0 %v196
    %683 = vmatpush1.bf16.msra.mxu0 %v195
    %684 = vmatprep.subr.bf16.mxu0 %v192
    %685 = vmatpush1.bf16.msra.mxu0 %v191
    %686 = vmatprep.subr.bf16.mxu0 %v188
    %687 = vmatpush1.bf16.msra.mxu0 %v187
    %688 = vmatprep.subr.bf16.mxu0 %v184
    %689 = vmatpush1.bf16.msra.mxu0 %v183
    %690 = vmatprep.subr.bf16.mxu0 %v244
    %691 = vmatpush2.bf16.msra.mxu0 %v243
    %692 = vmatprep.subr.bf16.mxu0 %v240
    %693 = vmatpush2.bf16.msra.mxu0 %v239
    %694 = vmatprep.subr.bf16.mxu0 %v236
    %695 = vmatpush2.bf16.msra.mxu0 %v235
    %696 = vmatprep.subr.bf16.mxu0 %v232
    %697 = vmatpush2.bf16.msra.mxu0 %v231
    %698 = vmatprep.subr.bf16.mxu0 %v228
    %699 = vmatpush2.bf16.msra.mxu0 %v227
    %700 = vmatprep.subr.bf16.mxu0 %v224
    %701 = vmatpush2.bf16.msra.mxu0 %v223
    %702 = vmatprep.subr.bf16.mxu0 %v220
    %703 = vmatpush2.bf16.msra.mxu0 %v219
    %704 = vmatprep.subr.bf16.mxu0 %v216
    %705 = vmatpush2.bf16.msra.mxu0 %v215
    %706 = vmatprep.mubr.bf16.mxu0 %v669
    %707 = vmatmul.mubr.bf16.gmra.mxu0 %v668
    %v708 = vpop.f32.mrf.mxu0
    %v709 = vadd.f32 0.0, %v708
    %v710 = vpop.f32.mrf.mxu0
    %v711 = vadd.f32 0.0, %v710
    %v712 = vpop.f32.mrf.mxu0
    %v713 = vpop.f32.mrf.mxu0
    %714 = vdwg.mxu0
    %715 = vmatprep.subr.bf16.mxu0 %v276
    %716 = vmatpush1.bf16.msra.mxu0 %v275
    %717 = vmatprep.subr.bf16.mxu0 %v272
    %718 = vmatpush1.bf16.msra.mxu0 %v271
    %719 = vmatprep.subr.bf16.mxu0 %v268
    %720 = vmatpush1.bf16.msra.mxu0 %v267
    %721 = vmatprep.subr.bf16.mxu0 %v264
    %722 = vmatpush1.bf16.msra.mxu0 %v263
    %723 = vmatprep.subr.bf16.mxu0 %v260
    %724 = vmatpush1.bf16.msra.mxu0 %v259
    %725 = vmatprep.subr.bf16.mxu0 %v256
    %726 = vmatpush1.bf16.msra.mxu0 %v255
    %727 = vmatprep.subr.bf16.mxu0 %v252
    %728 = vmatpush1.bf16.msra.mxu0 %v251
    %729 = vmatprep.subr.bf16.mxu0 %v248
    %730 = vmatpush1.bf16.msra.mxu0 %v247
    %731 = vmatprep.subr.bf16.mxu0 %v308
    %732 = vmatpush2.bf16.msra.mxu0 %v307
    %733 = vmatprep.subr.bf16.mxu0 %v304
    %734 = vmatpush2.bf16.msra.mxu0 %v303
    %735 = vmatprep.subr.bf16.mxu0 %v300
    %736 = vmatpush2.bf16.msra.mxu0 %v299
    %737 = vmatprep.subr.bf16.mxu0 %v296
    %738 = vmatpush2.bf16.msra.mxu0 %v295
    %739 = vmatprep.subr.bf16.mxu0 %v292
    %740 = vmatpush2.bf16.msra.mxu0 %v291
    %741 = vmatprep.subr.bf16.mxu0 %v288
    %742 = vmatpush2.bf16.msra.mxu0 %v287
    %743 = vmatprep.subr.bf16.mxu0 %v284
    %744 = vmatpush2.bf16.msra.mxu0 %v283
    %745 = vmatprep.subr.bf16.mxu0 %v280
    %746 = vmatpush2.bf16.msra.mxu0 %v279
    %747 = vmatprep.mubr.bf16.mxu0 %v671
    %748 = vmatmul.mubr.bf16.gmra.mxu0 %v670
    %v749 = vpop.f32.mrf.mxu0
    %v750 = vadd.f32 %v709, %v749
    %v751 = vpop.f32.mrf.mxu0
    %v752 = vadd.f32 %v711, %v751
    %v753 = vpop.f32.mrf.mxu0
    %v754 = vpop.f32.mrf.mxu0
    %755 = vdwg.mxu0
    %756 = vmatprep.subr.bf16.mxu0 %v340
    %757 = vmatpush1.bf16.msra.mxu0 %v339
    %758 = vmatprep.subr.bf16.mxu0 %v336
    %759 = vmatpush1.bf16.msra.mxu0 %v335
    %760 = vmatprep.subr.bf16.mxu0 %v332
    %761 = vmatpush1.bf16.msra.mxu0 %v331
    %762 = vmatprep.subr.bf16.mxu0 %v328
    %763 = vmatpush1.bf16.msra.mxu0 %v327
    %764 = vmatprep.subr.bf16.mxu0 %v324
    %765 = vmatpush1.bf16.msra.mxu0 %v323
    %766 = vmatprep.subr.bf16.mxu0 %v320
    %767 = vmatpush1.bf16.msra.mxu0 %v319
    %768 = vmatprep.subr.bf16.mxu0 %v316
    %769 = vmatpush1.bf16.msra.mxu0 %v315
    %770 = vmatprep.subr.bf16.mxu0 %v312
    %771 = vmatpush1.bf16.msra.mxu0 %v311
    %772 = vmatprep.subr.bf16.mxu0 %v372
    %773 = vmatpush2.bf16.msra.mxu0 %v371
    %774 = vmatprep.subr.bf16.mxu0 %v368
    %775 = vmatpush2.bf16.msra.mxu0 %v367
    %776 = vmatprep.subr.bf16.mxu0 %v364
    %777 = vmatpush2.bf16.msra.mxu0 %v363
    %778 = vmatprep.subr.bf16.mxu0 %v360
    %779 = vmatpush2.bf16.msra.mxu0 %v359
    %780 = vmatprep.subr.bf16.mxu0 %v356
    %781 = vmatpush2.bf16.msra.mxu0 %v355
    %782 = vmatprep.subr.bf16.mxu0 %v352
    %783 = vmatpush2.bf16.msra.mxu0 %v351
    %784 = vmatprep.subr.bf16.mxu0 %v348
    %785 = vmatpush2.bf16.msra.mxu0 %v347
    %786 = vmatprep.subr.bf16.mxu0 %v344
    %787 = vmatpush2.bf16.msra.mxu0 %v343
    %788 = vmatprep.mubr.bf16.mxu0 %v673
    %789 = vmatmul.mubr.bf16.gmra.mxu0 %v672
    %v790 = vpop.f32.mrf.mxu0
    %v791 = vadd.f32 %v750, %v790
    %v792 = vpop.f32.mrf.mxu0
    %v793 = vadd.f32 %v752, %v792
    %v794 = vpop.f32.mrf.mxu0
    %v795 = vpop.f32.mrf.mxu0
    %796 = vdwg.mxu0
    %797 = vmatprep.subr.bf16.mxu0 %v214
    %798 = vmatpush1.bf16.msra.mxu0 %v213
    %799 = vmatprep.subr.bf16.mxu0 %v210
    %800 = vmatpush1.bf16.msra.mxu0 %v209
    %801 = vmatprep.subr.bf16.mxu0 %v206
    %802 = vmatpush1.bf16.msra.mxu0 %v205
    %803 = vmatprep.subr.bf16.mxu0 %v202
    %804 = vmatpush1.bf16.msra.mxu0 %v201
    %805 = vmatprep.subr.bf16.mxu0 %v198
    %806 = vmatpush1.bf16.msra.mxu0 %v197
    %807 = vmatprep.subr.bf16.mxu0 %v194
    %808 = vmatpush1.bf16.msra.mxu0 %v193
    %809 = vmatprep.subr.bf16.mxu0 %v190
    %810 = vmatpush1.bf16.msra.mxu0 %v189
    %811 = vmatprep.subr.bf16.mxu0 %v186
    %812 = vmatpush1.bf16.msra.mxu0 %v185
    %813 = vmatprep.subr.bf16.mxu0 %v246
    %814 = vmatpush2.bf16.msra.mxu0 %v245
    %815 = vmatprep.subr.bf16.mxu0 %v242
    %816 = vmatpush2.bf16.msra.mxu0 %v241
    %817 = vmatprep.subr.bf16.mxu0 %v238
    %818 = vmatpush2.bf16.msra.mxu0 %v237
    %819 = vmatprep.subr.bf16.mxu0 %v234
    %820 = vmatpush2.bf16.msra.mxu0 %v233
    %821 = vmatprep.subr.bf16.mxu0 %v230
    %822 = vmatpush2.bf16.msra.mxu0 %v229
    %823 = vmatprep.subr.bf16.mxu0 %v226
    %824 = vmatpush2.bf16.msra.mxu0 %v225
    %825 = vmatprep.subr.bf16.mxu0 %v222
    %826 = vmatpush2.bf16.msra.mxu0 %v221
    %827 = vmatprep.subr.bf16.mxu0 %v218
    %828 = vmatpush2.bf16.msra.mxu0 %v217
    %829 = vmatprep.mubr.bf16.mxu0 %v669
    %830 = vmatmul.mubr.bf16.gmra.mxu0 %v668
    %v831 = vpop.f32.mrf.mxu0
    %v832 = vadd.f32 0.0, %v831
    %v833 = vpop.f32.mrf.mxu0
    %v834 = vadd.f32 0.0, %v833
    %v835 = vpop.f32.mrf.mxu0
    %v836 = vpop.f32.mrf.mxu0
    %837 = vdwg.mxu0
    %838 = vmatprep.subr.bf16.mxu0 %v278
    %839 = vmatpush1.bf16.msra.mxu0 %v277
    %840 = vmatprep.subr.bf16.mxu0 %v274
    %841 = vmatpush1.bf16.msra.mxu0 %v273
    %842 = vmatprep.subr.bf16.mxu0 %v270
    %843 = vmatpush1.bf16.msra.mxu0 %v269
    %844 = vmatprep.subr.bf16.mxu0 %v266
    %845 = vmatpush1.bf16.msra.mxu0 %v265
    %846 = vmatprep.subr.bf16.mxu0 %v262
    %847 = vmatpush1.bf16.msra.mxu0 %v261
    %848 = vmatprep.subr.bf16.mxu0 %v258
    %849 = vmatpush1.bf16.msra.mxu0 %v257
    %850 = vmatprep.subr.bf16.mxu0 %v254
    %851 = vmatpush1.bf16.msra.mxu0 %v253
    %852 = vmatprep.subr.bf16.mxu0 %v250
    %853 = vmatpush1.bf16.msra.mxu0 %v249
    %854 = vmatprep.subr.bf16.mxu0 %v310
    %855 = vmatpush2.bf16.msra.mxu0 %v309
    %856 = vmatprep.subr.bf16.mxu0 %v306
    %857 = vmatpush2.bf16.msra.mxu0 %v305
    %858 = vmatprep.subr.bf16.mxu0 %v302
    %859 = vmatpush2.bf16.msra.mxu0 %v301
    %860 = vmatprep.subr.bf16.mxu0 %v298
    %861 = vmatpush2.bf16.msra.mxu0 %v297
    %862 = vmatprep.subr.bf16.mxu0 %v294
    %863 = vmatpush2.bf16.msra.mxu0 %v293
    %864 = vmatprep.subr.bf16.mxu0 %v290
    %865 = vmatpush2.bf16.msra.mxu0 %v289
    %866 = vmatprep.subr.bf16.mxu0 %v286
    %867 = vmatpush2.bf16.msra.mxu0 %v285
    %868 = vmatprep.subr.bf16.mxu0 %v282
    %869 = vmatpush2.bf16.msra.mxu0 %v281
    %870 = vmatprep.mubr.bf16.mxu0 %v671
    %871 = vmatmul.mubr.bf16.gmra.mxu0 %v670
    %v872 = vpop.f32.mrf.mxu0
    %v873 = vadd.f32 %v832, %v872
    %v874 = vpop.f32.mrf.mxu0
    %v875 = vadd.f32 %v834, %v874
    %v876 = vpop.f32.mrf.mxu0
    %v877 = vpop.f32.mrf.mxu0
    %878 = vdwg.mxu0
    %879 = vmatprep.subr.bf16.mxu0 %v342
    %880 = vmatpush1.bf16.msra.mxu0 %v341
    %881 = vmatprep.subr.bf16.mxu0 %v338
    %882 = vmatpush1.bf16.msra.mxu0 %v337
    %883 = vmatprep.subr.bf16.mxu0 %v334
    %884 = vmatpush1.bf16.msra.mxu0 %v333
    %885 = vmatprep.subr.bf16.mxu0 %v330
    %886 = vmatpush1.bf16.msra.mxu0 %v329
    %887 = vmatprep.subr.bf16.mxu0 %v326
    %888 = vmatpush1.bf16.msra.mxu0 %v325
    %889 = vmatprep.subr.bf16.mxu0 %v322
    %890 = vmatpush1.bf16.msra.mxu0 %v321
    %891 = vmatprep.subr.bf16.mxu0 %v318
    %892 = vmatpush1.bf16.msra.mxu0 %v317
    %893 = vmatprep.subr.bf16.mxu0 %v314
    %894 = vmatpush1.bf16.msra.mxu0 %v313
    %895 = vmatprep.subr.bf16.mxu0 %v374
    %896 = vmatpush2.bf16.msra.mxu0 %v373
    %897 = vmatprep.subr.bf16.mxu0 %v370
    %898 = vmatpush2.bf16.msra.mxu0 %v369
    %899 = vmatprep.subr.bf16.mxu0 %v366
    %900 = vmatpush2.bf16.msra.mxu0 %v365
    %901 = vmatprep.subr.bf16.mxu0 %v362
    %902 = vmatpush2.bf16.msra.mxu0 %v361
    %903 = vmatprep.subr.bf16.mxu0 %v358
    %904 = vmatpush2.bf16.msra.mxu0 %v357
    %905 = vmatprep.subr.bf16.mxu0 %v354
    %906 = vmatpush2.bf16.msra.mxu0 %v353
    %907 = vmatprep.subr.bf16.mxu0 %v350
    %908 = vmatpush2.bf16.msra.mxu0 %v349
    %909 = vmatprep.subr.bf16.mxu0 %v346
    %910 = vmatpush2.bf16.msra.mxu0 %v345
    %911 = vmatprep.mubr.bf16.mxu0 %v673
    %912 = vmatmul.mubr.bf16.gmra.mxu0 %v672
    %v913 = vpop.f32.mrf.mxu0
    %v914 = vadd.f32 %v873, %v913
    %v915 = vpop.f32.mrf.mxu0
    %v916 = vadd.f32 %v875, %v915
    %v917 = vpop.f32.mrf.mxu0
    %v918 = vpop.f32.mrf.mxu0
    %919 = vdwg.mxu0
    %v924 = vcombine.low %v791, %v793
    %v925 = vcombine.low %v914, %v916
    %v928 = vadd.f32 %v654, %v924
    %v929 = vadd.f32 %v655, %v925
    %930 = vst [vmem:[%s653] sm:$0xff] %v928
    %931 = vst [vmem:[%s653 + $0x8] sm:$0xff] %v929
    // Predicated region
    $region22: #{forward.2} parent=1 // pred_check
      _
    $region23: #{forward.2} parent=1 // pred_check_branch
      %933 = sbr.rel (0) target = $region25
    $region24: #{forward.2} parent=1 // pred_region
      _
    $region25: #{forward.2} parent=1 // pred_fallthru
      _
    // Predicated region
    $region26: #{forward.2} parent=1 // pred_check
      _
    $region27: #{forward.2} parent=1 // pred_check_branch
      %935 = sbr.rel (0) target = $region29
    $region28: #{forward.2} parent=1 // pred_region
      _
    $region29: #{forward.2} parent=1 // pred_fallthru
      _
    %936 = vsyncpa [#allocation3], 1

</llo_original>
